<compile_context>
chip_gen: v7x
topology: tpu7x:2x2x1
jax: 0.10.0
libtpu: 0.0.40
codegen_flags: <defaults>
</compile_context>

<pallas_src>
import jax
import jax.numpy as jnp
from jax.experimental import pallas as pl
from jax.experimental.pallas import tpu as pltpu

IN_DIM = 3
HIDDEN = 64
OUT_DIM = 1


def _round_up(n, m):
    return ((n + m - 1) // m) * m


def stop_policy_kernel(x_ref, w1_ref, b1_ref, w2_ref, b2_ref, o_ref):
    # x_ref : [3, TB]   (batch on the lane axis)
    # w1_ref: [64, 3]   b1_ref: [64, 1]
    # w2_ref: [1, 64]   b2_ref: [1]  (SMEM scalar)
    # o_ref : [1, TB]
    # Layer 1 on the MXU: (64,3) @ (3,TB) -> (64,TB); bias broadcast + ReLU on the VPU.
    h = jnp.dot(
        w1_ref[...], x_ref[...],
        preferred_element_type=jnp.float32,
        precision=jax.lax.Precision.HIGHEST,
    ) + b1_ref[...]
    h = jnp.maximum(h, 0.0)                                   # ReLU, [64, TB]

    # Layer 2 on the MXU: (1,64) @ (64,TB) -> (1,TB); lane-dense output.
    y = jnp.dot(
        w2_ref[...], h,
        preferred_element_type=jnp.float32,
        precision=jax.lax.Precision.HIGHEST,
    ) + b2_ref[0]
    o_ref[...] = y.astype(o_ref.dtype)


def stop_policy_reference(x, w1, b1, w2, b2):
    """Plain-JAX reference (PyTorch param layout: w1 [64,3], b1 [64], w2 [1,64], b2 [1])."""
    hp = jax.lax.Precision.HIGHEST
    h = jnp.maximum(jnp.dot(x, w1.T, precision=hp) + b1, 0.0)
    return jnp.dot(h, w2.T, precision=hp) + b2


def stop_policy_net(x, w1, b1, w2, b2, *, block_b=4096, min_pallas_batch=1024):
    """Forward pass of StopPolicyNet.

    x : [B, 3] float32
    w1: [64, 3]   b1: [64]      (PyTorch nn.Linear(3, 64) layout)
    w2: [1, 64]   b2: [1]       (PyTorch nn.Linear(64, 1) layout)
    returns [B, 1] float32
    """
    B = x.shape[0]
    if B < min_pallas_batch:
        # Tiny batches: custom-call dispatch + per-step overhead + wrapper layout
        # copies dwarf the few hundred FLOPs per row; plain fused XLA wins.
        return stop_policy_reference(x, w1, b1, w2, b2)

    # Params in the layouts the kernel expects (all tiny, one-time).
    w1m = w1.astype(jnp.float32)                              # [64, 3]
    b1c = b1.astype(jnp.float32).reshape(HIDDEN, 1)           # [64, 1]
    w2r = w2.astype(jnp.float32).reshape(OUT_DIM, HIDDEN)     # [1, 64]  (native layout)
    b2s = b2.astype(jnp.float32).reshape(OUT_DIM)             # [1]   -> SMEM scalar

    # Batch tile: multiple of 128 lanes; pad B so every tile is full.
    tb = min(_round_up(block_b, 128), _round_up(B, 128))
    num_blocks = pl.cdiv(B, tb)
    b_pad = num_blocks * tb

    # Fused layout plumbing: one op builds the zero-padded, feature-major [3, b_pad]
    # buffer (transpose fuses into the update) instead of separate .T + pad passes.
    # TODO(synk): if upstream can supply x feature-major ([3, B]), drop this entirely.
    xt = x.astype(jnp.float32).T                              # [3, B]
    if b_pad != B:
        xt = jnp.zeros((IN_DIM, b_pad), jnp.float32).at[:, :B].set(xt)

    out_t = pl.pallas_call(
        stop_policy_kernel,
        out_shape=jax.ShapeDtypeStruct((OUT_DIM, b_pad), jnp.float32),
        grid=(num_blocks,),
        in_specs=[
            pl.BlockSpec((IN_DIM, tb), lambda i: (0, i)),        # x tile, lane-dense
            pl.BlockSpec((HIDDEN, IN_DIM), lambda i: (0, 0)),    # weights stay VMEM-resident
            pl.BlockSpec((HIDDEN, 1), lambda i: (0, 0)),
            pl.BlockSpec((OUT_DIM, HIDDEN), lambda i: (0, 0)),
            pl.BlockSpec(memory_space=pltpu.MemorySpace.SMEM),   # b2 scalar in SMEM
        ],
        out_specs=pl.BlockSpec((OUT_DIM, tb), lambda i: (0, i)),  # lane-dense output
        compiler_params=pltpu.CompilerParams(
            dimension_semantics=("parallel",),                   # v7x: shard across 2 TCs
        ),
    )(xt, w1m, b1c, w2r, b2s)

    return out_t[:, :B].T                                        # [B, 1]


def init_params(key):
    # Deterministic synthetic init (PyTorch-style uniform(-1/sqrt(fan_in), 1/sqrt(fan_in))),
    # stored in PyTorch layouts.
    k1, k2, k3, k4 = jax.random.split(key, 4)
    bound1 = 1.0 / jnp.sqrt(float(IN_DIM))
    bound2 = 1.0 / jnp.sqrt(float(HIDDEN))
    w1 = jax.random.uniform(k1, (HIDDEN, IN_DIM), jnp.float32, -bound1, bound1)
    b1 = jax.random.uniform(k2, (HIDDEN,), jnp.float32, -bound1, bound1)
    w2 = jax.random.uniform(k3, (OUT_DIM, HIDDEN), jnp.float32, -bound2, bound2)
    b2 = jax.random.uniform(k4, (OUT_DIM,), jnp.float32, -bound2, bound2)
    return w1, b1, w2, b2


if __name__ == "__main__":
    key = jax.random.PRNGKey(0)
    kx, kx2, kp = jax.random.split(key, 3)
    w1, b1, w2, b2 = init_params(kp)

    # Small batch (forces the Pallas path with min_pallas_batch=0) that exercises the
    # zero-padded tail tile: 300 rows -> one 384-lane tile.
    batch = 300
    x = jax.random.normal(kx, (batch, IN_DIM), jnp.float32)
    out = stop_policy_net(x, w1, b1, w2, b2, block_b=4096, min_pallas_batch=0)
    out = jax.block_until_ready(out)
    ref = stop_policy_reference(x, w1, b1, w2, b2)
    assert out.shape == (batch, OUT_DIM), out.shape
    assert jnp.allclose(out, ref, atol=1e-4, rtol=1e-4)

    # Multi-tile path: 1500 rows with a 512-lane tile -> 3 grid steps, exercising the
    # double-buffered x/out pipeline and VMEM-resident weight blocks.
    batch2 = 1500
    x2 = jax.random.normal(kx2, (batch2, IN_DIM), jnp.float32)
    out2 = jax.block_until_ready(
        stop_policy_net(x2, w1, b1, w2, b2, block_b=512, min_pallas_batch=0)
    )
    ref2 = stop_policy_reference(x2, w1, b1, w2, b2)
    assert out2.shape == (batch2, OUT_DIM), out2.shape
    assert jnp.allclose(out2, ref2, atol=1e-4, rtol=1e-4)

    print("KERNEL_OK")
</pallas_src>

<mosaic_0001>
module attributes {stable_mosaic.version = 11 : i64} {
  func.func @stop_policy_kernel(%arg0: i32, %arg1: memref<3x384xf32, #tpu.memory_space<vmem>>, %arg2: memref<64x3xf32, #tpu.memory_space<vmem>>, %arg3: memref<64x1xf32, #tpu.memory_space<vmem>>, %arg4: memref<1x64xf32, #tpu.memory_space<vmem>>, %arg5: memref<1xf32, #tpu.memory_space<smem>>, %arg6: memref<1x384xf32, #tpu.memory_space<vmem>>) attributes {dimension_semantics = [#tpu.dimension_semantics<parallel>], iteration_bounds = array<i64: 1>, scalar_prefetch = 0 : i64, scratch_operands = 0 : i64, tpu.core_type = #tpu.core_type<tc>, window_params = [{transform_indices = @transform_0, window_bounds = array<i64: 3, 384>}, {pipeline_mode = #tpu.pipeline_mode<synchronous>, transform_indices = @transform_1, window_bounds = array<i64: 64, 3>}, {pipeline_mode = #tpu.pipeline_mode<synchronous>, transform_indices = @transform_2, window_bounds = array<i64: 64, 1>}, {pipeline_mode = #tpu.pipeline_mode<synchronous>, transform_indices = @transform_3, window_bounds = array<i64: 1, 64>}, {transform_indices = @transform_4, window_bounds = array<i64: 1>}, {transform_indices = @transform_5, window_bounds = array<i64: 1, 384>}]} {
    %c0 = arith.constant 0 : index
    %c0_0 = arith.constant 0 : index
    %0 = vector.load %arg2[%c0, %c0_0] : memref<64x3xf32, #tpu.memory_space<vmem>>, vector<64x3xf32>
    %c0_1 = arith.constant 0 : index
    %c0_2 = arith.constant 0 : index
    %1 = vector.load %arg1[%c0_1, %c0_2] : memref<3x384xf32, #tpu.memory_space<vmem>>, vector<3x384xf32>
    %cst = arith.constant dense<0.000000e+00> : vector<64x384xf32>
    %2 = tpu.matmul %0, %1, %cst {dimension_numbers = #tpu.dot_dimension_numbers<[1], [0], [0], [1], [0, 0, 1, 1], [], []>, precision = #tpu.contract_precision<fp32>} : vector<64x3xf32>, vector<3x384xf32>, vector<64x384xf32> -> vector<64x384xf32>
    %c0_3 = arith.constant 0 : index
    %c0_4 = arith.constant 0 : index
    %3 = vector.load %arg3[%c0_3, %c0_4] : memref<64x1xf32, #tpu.memory_space<vmem>>, vector<64x1xf32>
    %4 = vector.broadcast %3 : vector<64x1xf32> to vector<64x384xf32>
    %5 = arith.addf %2, %4 : vector<64x384xf32>
    %cst_5 = arith.constant 0.000000e+00 : f32
    %6 = vector.broadcast %cst_5 : f32 to vector<64x384xf32>
    %7 = arith.maximumf %5, %6 : vector<64x384xf32>
    %c0_6 = arith.constant 0 : index
    %c0_7 = arith.constant 0 : index
    %8 = vector.load %arg4[%c0_6, %c0_7] : memref<1x64xf32, #tpu.memory_space<vmem>>, vector<1x64xf32>
    %cst_8 = arith.constant dense<0.000000e+00> : vector<1x384xf32>
    %9 = tpu.matmul %8, %7, %cst_8 {dimension_numbers = #tpu.dot_dimension_numbers<[1], [0], [0], [1], [0, 0, 1, 1], [], []>, precision = #tpu.contract_precision<fp32>} : vector<1x64xf32>, vector<64x384xf32>, vector<1x384xf32> -> vector<1x384xf32>
    %c0_9 = arith.constant 0 : index
    %10 = memref.load %arg5[%c0_9] : memref<1xf32, #tpu.memory_space<smem>>
    %11 = vector.broadcast %10 : f32 to vector<1x384xf32>
    %12 = arith.addf %9, %11 : vector<1x384xf32>
    %c0_10 = arith.constant 0 : index
    %c0_11 = arith.constant 0 : index
    %13 = vector.load %arg6[%c0_10, %c0_11] : memref<1x384xf32, #tpu.memory_space<vmem>>, vector<1x384xf32>
    tpu.vector_store %arg6[%c0_10, %c0_11], %12 {strides = array<i32>} : memref<1x384xf32, #tpu.memory_space<vmem>>, vector<1x384xf32>,
    return
  }
  func.func @transform_0(%arg0: i32) -> (i32, i32) {
    %c0_i32 = arith.constant 0 : i32
    %c0_i32_0 = arith.constant 0 : i32
    return %c0_i32, %arg0 : i32, i32
  }
  func.func @transform_1(%arg0: i32) -> (i32, i32) {
    %c0_i32 = arith.constant 0 : i32
    %c0_i32_0 = arith.constant 0 : i32
    %c0_i32_1 = arith.constant 0 : i32
    return %c0_i32, %c0_i32_0 : i32, i32
  }
  func.func @transform_2(%arg0: i32) -> (i32, i32) {
    %c0_i32 = arith.constant 0 : i32
    %c0_i32_0 = arith.constant 0 : i32
    %c0_i32_1 = arith.constant 0 : i32
    return %c0_i32, %c0_i32_0 : i32, i32
  }
  func.func @transform_3(%arg0: i32) -> (i32, i32) {
    %c0_i32 = arith.constant 0 : i32
    %c0_i32_0 = arith.constant 0 : i32
    %c0_i32_1 = arith.constant 0 : i32
    return %c0_i32, %c0_i32_0 : i32, i32
  }
  func.func @transform_4(%arg0: i32) -> i32 {
    %c0_i32 = arith.constant 0 : i32
    %c0_i32_0 = arith.constant 0 : i32
    return %c0_i32 : i32
  }
  func.func @transform_5(%arg0: i32) -> (i32, i32) {
    %c0_i32 = arith.constant 0 : i32
    %c0_i32_0 = arith.constant 0 : i32
    return %c0_i32, %arg0 : i32, i32
  }
}

</mosaic_0001>

<llo_original>
// kernel: tpu_custom_call.1
$region0: #{tpu_custom_call.1}
  #allocation0 [shape = 'u32[]', space=smem, size = 0x4, offset = 0x4, fixed_abs, tag = 'smem constant byte address 0x4 - core index']
  #allocation1 [shape = 'u32[144,128]{1,0:T(1,128)}', space=vmem, size = 0x12000, scoped, tag = 'internal scratch']
  #allocation2 [shape = 'f32[1]{0:T(128)S(6)}', space=smem, size = 0x200, scoped, tag = 'scoped memory for tpu_custom_call.1']
  %s0 = inlined_call_operand.vmem [shape: f32[3,384], index: 0, kind: input, shape index: {}]
  %s1 = inlined_call_operand.vmem [shape: f32[64,3], index: 1, kind: input, shape index: {}]
  %s2 = inlined_call_operand.vmem [shape: f32[64,1], index: 2, kind: input, shape index: {}]
  %s3 = inlined_call_operand.vmem [shape: f32[1,64], index: 3, kind: input, shape index: {}]
  %s4 = inlined_call_operand.<no memory space> [shape: f32[1], index: 4, kind: input, shape index: {}]
  %s5 = inlined_call_operand.hbm [shape: f32[1,384], index: 5, kind: output, shape index: {}]
  %s6 = sld [smem:[#allocation0]]
  $region30: #{tpu_custom_call.1} parent=0
    _
  %s8 = ssub.s32 1, %s6
  %s9 = scalar_select 0, %s8, %s6
  %10 = sst [smem:[#allocation2]] %s4
  $region1: #{tpu_custom_call.1} parent=0
    #allocation3 [shape = 'u8[1536]{0}', space=vmem, size = 0x800, scoped, tag = 'output window, operand 0, single buffered']
    #allocation4 [shape = 's32[1]{0}', space=sflag, size = 0x4, scoped, tag = 'scoped memory for tpu_custom_call.1']
    %11 = vsyncpa [#allocation4], 0
    // Predicated region
    $region2: #{tpu_custom_call.1} parent=1 // pred_check
      _
    $region3: #{tpu_custom_call.1} parent=1 // pred_check_branch
      %13 = sbr.rel (0) target = $region5
    $region4: #{tpu_custom_call.1} parent=1 // pred_region
      _
    $region5: #{tpu_custom_call.1} parent=1 // pred_fallthru
      _
    // Predicated region
    $region6: #{tpu_custom_call.1} parent=1 // pred_check
      _
    $region7: #{tpu_custom_call.1} parent=1 // pred_check_branch
      %15 = sbr.rel (0) target = $region9
    $region8: #{tpu_custom_call.1} parent=1 // pred_region
      _
    $region9: #{tpu_custom_call.1} parent=1 // pred_fallthru
      _
    // Predicated region
    $region10: #{tpu_custom_call.1} parent=1 // pred_check
      _
    $region11: #{tpu_custom_call.1} parent=1 // pred_check_branch
      %17 = sbr.rel (0) target = $region13
    $region12: #{tpu_custom_call.1} parent=1 // pred_region
      _
    $region13: #{tpu_custom_call.1} parent=1 // pred_fallthru
      _
    // Predicated region
    $region14: #{tpu_custom_call.1} parent=1 // pred_check
      _
    $region15: #{tpu_custom_call.1} parent=1 // pred_check_branch
      %19 = sbr.rel (0) target = $region17
    $region16: #{tpu_custom_call.1} parent=1 // pred_region
      _
    $region17: #{tpu_custom_call.1} parent=1 // pred_fallthru
      _
    // Predicated region
    $region18: #{tpu_custom_call.1} parent=1 // pred_check
      _
    $region19: #{tpu_custom_call.1} parent=1 // pred_check_branch
      %21 = sbr.rel (0) target = $region21
    $region20: #{tpu_custom_call.1} parent=1 // pred_region
      _
    $region21: #{tpu_custom_call.1} parent=1 // pred_fallthru
      _
    %v22 = vld [vmem:[%s1] sm:$0xff]
    %v23 = vld [vmem:[%s1 + $0x8] sm:$0xff]
    %v24 = vld [vmem:[%s1 + $0x10] sm:$0xff]
    %v25 = vld [vmem:[%s1 + $0x18] sm:$0xff]
    %v26 = vld [vmem:[%s1 + $0x20] sm:$0xff]
    %v27 = vld [vmem:[%s1 + $0x28] sm:$0xff]
    %v28 = vld [vmem:[%s1 + $0x30] sm:$0xff]
    %v29 = vld [vmem:[%s1 + $0x38] sm:$0xff]
    %v30 = vld [vmem:[%s0] sm:$0x77]
    %v31 = vld [vmem:[%s0 + $0x8] sm:$0x7]
    %v32 = vld [vmem:[%s2] sm:$0xff]
    %v33 = vld [vmem:[%s2 + $0x8] sm:$0xff]
    %v34 = vld [vmem:[%s2 + $0x10] sm:$0xff]
    %v35 = vld [vmem:[%s2 + $0x18] sm:$0xff]
    %v36 = vld [vmem:[%s2 + $0x20] sm:$0xff]
    %v37 = vld [vmem:[%s2 + $0x28] sm:$0xff]
    %v38 = vld [vmem:[%s2 + $0x30] sm:$0xff]
    %v39 = vld [vmem:[%s2 + $0x38] sm:$0xff]
    %41 = vset.pattern.permute.xlu0 0
    %42 = vperm.xlu0 %41, %v32
    %v43 = vpop.permute.xlu0 %42
    %46 = vset.pattern.permute.xlu0 0
    %47 = vperm.xlu0 %46, %v33
    %v48 = vpop.permute.xlu0 %47
    %51 = vset.pattern.permute.xlu0 0
    %52 = vperm.xlu0 %51, %v34
    %v53 = vpop.permute.xlu0 %52
    %56 = vset.pattern.permute.xlu0 0
    %57 = vperm.xlu0 %56, %v35
    %v58 = vpop.permute.xlu0 %57
    %61 = vset.pattern.permute.xlu0 0
    %62 = vperm.xlu0 %61, %v36
    %v63 = vpop.permute.xlu0 %62
    %66 = vset.pattern.permute.xlu0 0
    %67 = vperm.xlu0 %66, %v37
    %v68 = vpop.permute.xlu0 %67
    %71 = vset.pattern.permute.xlu0 0
    %72 = vperm.xlu0 %71, %v38
    %v73 = vpop.permute.xlu0 %72
    %76 = vset.pattern.permute.xlu0 0
    %77 = vperm.xlu0 %76, %v39
    %v78 = vpop.permute.xlu0 %77
    %v82 = vcombine.high %v30, %v30
    %vm83 = vcmask 23552
    %v85 = vsel %vm83, %v22, 0
    %v88 = vsel %vm83, %v23, 0
    %v91 = vsel %vm83, %v24, 0
    %v94 = vsel %vm83, %v25, 0
    %v97 = vsel %vm83, %v26, 0
    %v100 = vsel %vm83, %v27, 0
    %v103 = vsel %vm83, %v28, 0
    %v106 = vsel %vm83, %v29, 0
    %vm108 = vcmask 1042432
    %v109 = vsel %vm108, %v30, 0
    %v111 = vsel %vm108, %v82, 0
    %v113 = vsel %vm108, %v31, 0
    %v115 = vand.u32 %v111, 4294901760
    %116 = vmatprep.subr.mxu0 %v115
    %v117 = vand.u32 %v109, 4294901760
    %118 = vmatpush1.msra.mxu0 %v117
    %119 = vmatprep.subr.mxu0 0.0
    %120 = vmatpush1.msra.mxu0 0.0
    %121 = vmatprep.subr.mxu0 0.0
    %122 = vmatpush1.msra.mxu0 0.0
    %123 = vmatprep.subr.mxu0 0.0
    %124 = vmatpush1.msra.mxu0 0.0
    %125 = vmatprep.subr.mxu0 0.0
    %126 = vmatpush1.msra.mxu0 0.0
    %127 = vmatprep.subr.mxu0 0.0
    %128 = vmatpush1.msra.mxu0 0.0
    %129 = vmatprep.subr.mxu0 0.0
    %130 = vmatpush1.msra.mxu0 0.0
    %131 = vmatprep.subr.mxu0 0.0
    %132 = vmatpush1.msra.mxu0 0.0
    %133 = vmatprep.subr.mxu0 0.0
    %134 = vmatpush1.msra.mxu0 0.0
    %135 = vmatprep.subr.mxu0 0.0
    %136 = vmatpush1.msra.mxu0 0.0
    %137 = vmatprep.subr.mxu0 0.0
    %138 = vmatpush1.msra.mxu0 0.0
    %139 = vmatprep.subr.mxu0 0.0
    %140 = vmatpush1.msra.mxu0 0.0
    %141 = vmatprep.subr.mxu0 0.0
    %142 = vmatpush1.msra.mxu0 0.0
    %143 = vmatprep.subr.mxu0 0.0
    %144 = vmatpush1.msra.mxu0 0.0
    %145 = vmatprep.subr.mxu0 0.0
    %146 = vmatpush1.msra.mxu0 0.0
    %147 = vmatprep.subr.mxu0 0.0
    %148 = vmatpush1.msra.mxu0 0.0
    %149 = vmatprep.subr.mxu0 0.0
    %150 = vmatpush1.msra.mxu0 0.0
    %151 = vmatprep.subr.mxu0 0.0
    %152 = vmatpush1.msra.mxu0 0.0
    %153 = vmatprep.subr.mxu0 0.0
    %154 = vmatpush1.msra.mxu0 0.0
    %155 = vmatprep.subr.mxu0 0.0
    %156 = vmatpush1.msra.mxu0 0.0
    %157 = vmatprep.subr.mxu0 0.0
    %158 = vmatpush1.msra.mxu0 0.0
    %159 = vmatprep.subr.mxu0 0.0
    %160 = vmatpush1.msra.mxu0 0.0
    %161 = vmatprep.subr.mxu0 0.0
    %162 = vmatpush1.msra.mxu0 0.0
    %163 = vmatprep.subr.mxu0 0.0
    %164 = vmatpush1.msra.mxu0 0.0
    %165 = vmatprep.subr.mxu0 0.0
    %166 = vmatpush1.msra.mxu0 0.0
    %167 = vmatprep.subr.mxu0 0.0
    %168 = vmatpush1.msra.mxu0 0.0
    %169 = vmatprep.subr.mxu0 0.0
    %170 = vmatpush1.msra.mxu0 0.0
    %171 = vmatprep.subr.mxu0 0.0
    %172 = vmatpush1.msra.mxu0 0.0
    %173 = vmatprep.subr.mxu0 0.0
    %174 = vmatpush1.msra.mxu0 0.0
    %175 = vmatprep.subr.mxu0 0.0
    %176 = vmatpush1.msra.mxu0 0.0
    %177 = vmatprep.subr.mxu0 0.0
    %178 = vmatpush1.msra.mxu0 0.0
    %179 = vmatprep.subr.mxu0 0.0
    %180 = vmatpush1.msra.mxu0 0.0
    %181 = vmatprep.mubr.f32.mxu0 0.0
    %v182 = vand.u32 %v85, 4294901760
    %v183 = vsub.f32 %v85, %v182
    %v184 = vand.u32 %v183, 4294901760
    %v185 = vsub.f32 %v183, %v184
    %v186 = vand.u32 %v185, 4294901760
    %187 = vmatmul.mubr.f32.gmra.mrb[0].mxu0 %v186
    %v188 = vpop.f32.mrb[0].mxu0
    %v189 = vadd.f32 %v43, %v188
    %v190 = vpop.f32.mrb[0].mxu0
    %v191 = vadd.f32 %v43, %v190
    %192 = vmatprep.mubr.f32.mxu0 0.0
    %v193 = vand.u32 %v88, 4294901760
    %v194 = vsub.f32 %v88, %v193
    %v195 = vand.u32 %v194, 4294901760
    %v196 = vsub.f32 %v194, %v195
    %v197 = vand.u32 %v196, 4294901760
    %198 = vmatmul.mubr.f32.gmra.mrb[0].mxu0 %v197
    %v199 = vpop.f32.mrb[0].mxu0
    %v200 = vadd.f32 %v48, %v199
    %v201 = vpop.f32.mrb[0].mxu0
    %v202 = vadd.f32 %v48, %v201
    %203 = vmatprep.mubr.f32.mxu0 0.0
    %v204 = vand.u32 %v91, 4294901760
    %v205 = vsub.f32 %v91, %v204
    %v206 = vand.u32 %v205, 4294901760
    %v207 = vsub.f32 %v205, %v206
    %v208 = vand.u32 %v207, 4294901760
    %209 = vmatmul.mubr.f32.gmra.mrb[0].mxu0 %v208
    %v210 = vpop.f32.mrb[0].mxu0
    %v211 = vadd.f32 %v53, %v210
    %v212 = vpop.f32.mrb[0].mxu0
    %v213 = vadd.f32 %v53, %v212
    %214 = vmatprep.mubr.f32.mxu0 0.0
    %v215 = vand.u32 %v94, 4294901760
    %v216 = vsub.f32 %v94, %v215
    %v217 = vand.u32 %v216, 4294901760
    %v218 = vsub.f32 %v216, %v217
    %v219 = vand.u32 %v218, 4294901760
    %220 = vmatmul.mubr.f32.gmra.mrb[0].mxu0 %v219
    %v221 = vpop.f32.mrb[0].mxu0
    %v222 = vadd.f32 %v58, %v221
    %v223 = vpop.f32.mrb[0].mxu0
    %v224 = vadd.f32 %v58, %v223
    %225 = vmatprep.mubr.f32.mxu0 0.0
    %v226 = vand.u32 %v97, 4294901760
    %v227 = vsub.f32 %v97, %v226
    %v228 = vand.u32 %v227, 4294901760
    %v229 = vsub.f32 %v227, %v228
    %v230 = vand.u32 %v229, 4294901760
    %231 = vmatmul.mubr.f32.gmra.mrb[0].mxu0 %v230
    %v232 = vpop.f32.mrb[0].mxu0
    %v233 = vadd.f32 %v63, %v232
    %v234 = vpop.f32.mrb[0].mxu0
    %v235 = vadd.f32 %v63, %v234
    %236 = vmatprep.mubr.f32.mxu0 0.0
    %v237 = vand.u32 %v100, 4294901760
    %v238 = vsub.f32 %v100, %v237
    %v239 = vand.u32 %v238, 4294901760
    %v240 = vsub.f32 %v238, %v239
    %v241 = vand.u32 %v240, 4294901760
    %242 = vmatmul.mubr.f32.gmra.mrb[0].mxu0 %v241
    %v243 = vpop.f32.mrb[0].mxu0
    %v244 = vadd.f32 %v68, %v243
    %v245 = vpop.f32.mrb[0].mxu0
    %v246 = vadd.f32 %v68, %v245
    %247 = vmatprep.mubr.f32.mxu0 0.0
    %v248 = vand.u32 %v103, 4294901760
    %v249 = vsub.f32 %v103, %v248
    %v250 = vand.u32 %v249, 4294901760
    %v251 = vsub.f32 %v249, %v250
    %v252 = vand.u32 %v251, 4294901760
    %253 = vmatmul.mubr.f32.gmra.mrb[0].mxu0 %v252
    %v254 = vpop.f32.mrb[0].mxu0
    %v255 = vadd.f32 %v73, %v254
    %v256 = vpop.f32.mrb[0].mxu0
    %v257 = vadd.f32 %v73, %v256
    %258 = vmatprep.mubr.f32.mxu0 0.0
    %v259 = vand.u32 %v106, 4294901760
    %v260 = vsub.f32 %v106, %v259
    %v261 = vand.u32 %v260, 4294901760
    %v262 = vsub.f32 %v260, %v261
    %v263 = vand.u32 %v262, 4294901760
    %264 = vmatmul.mubr.f32.gmra.mrb[0].mxu0 %v263
    %v265 = vpop.f32.mrb[0].mxu0
    %v266 = vadd.f32 %v78, %v265
    %v267 = vpop.f32.mrb[0].mxu0
    %v268 = vadd.f32 %v78, %v267
    %269 = vdwg.mxu0
    %v270 = vand.u32 %v111, 4294901760
    %v271 = vsub.f32 %v111, %v270
    %v272 = vand.u32 %v271, 4294901760
    %v273 = vsub.f32 %v271, %v272
    %v274 = vand.u32 %v273, 4294901760
    %275 = vmatprep.subr.mxu0 %v274
    %v276 = vand.u32 %v109, 4294901760
    %v277 = vsub.f32 %v109, %v276
    %v278 = vand.u32 %v277, 4294901760
    %v279 = vsub.f32 %v277, %v278
    %v280 = vand.u32 %v279, 4294901760
    %281 = vmatpush1.msra.mxu0 %v280
    %282 = vmatprep.subr.mxu0 0.0
    %283 = vmatpush1.msra.mxu0 0.0
    %284 = vmatprep.subr.mxu0 0.0
    %285 = vmatpush1.msra.mxu0 0.0
    %286 = vmatprep.subr.mxu0 0.0
    %287 = vmatpush1.msra.mxu0 0.0
    %288 = vmatprep.subr.mxu0 0.0
    %289 = vmatpush1.msra.mxu0 0.0
    %290 = vmatprep.subr.mxu0 0.0
    %291 = vmatpush1.msra.mxu0 0.0
    %292 = vmatprep.subr.mxu0 0.0
    %293 = vmatpush1.msra.mxu0 0.0
    %294 = vmatprep.subr.mxu0 0.0
    %295 = vmatpush1.msra.mxu0 0.0
    %296 = vmatprep.subr.mxu0 0.0
    %297 = vmatpush1.msra.mxu0 0.0
    %298 = vmatprep.subr.mxu0 0.0
    %299 = vmatpush1.msra.mxu0 0.0
    %300 = vmatprep.subr.mxu0 0.0
    %301 = vmatpush1.msra.mxu0 0.0
    %302 = vmatprep.subr.mxu0 0.0
    %303 = vmatpush1.msra.mxu0 0.0
    %304 = vmatprep.subr.mxu0 0.0
    %305 = vmatpush1.msra.mxu0 0.0
    %306 = vmatprep.subr.mxu0 0.0
    %307 = vmatpush1.msra.mxu0 0.0
    %308 = vmatprep.subr.mxu0 0.0
    %309 = vmatpush1.msra.mxu0 0.0
    %310 = vmatprep.subr.mxu0 0.0
    %311 = vmatpush1.msra.mxu0 0.0
    %312 = vmatprep.subr.mxu0 0.0
    %313 = vmatpush1.msra.mxu0 0.0
    %314 = vmatprep.subr.mxu0 0.0
    %315 = vmatpush1.msra.mxu0 0.0
    %316 = vmatprep.subr.mxu0 0.0
    %317 = vmatpush1.msra.mxu0 0.0
    %318 = vmatprep.subr.mxu0 0.0
    %319 = vmatpush1.msra.mxu0 0.0
    %320 = vmatprep.subr.mxu0 0.0
    %321 = vmatpush1.msra.mxu0 0.0
    %322 = vmatprep.subr.mxu0 0.0
    %323 = vmatpush1.msra.mxu0 0.0
    %324 = vmatprep.subr.mxu0 0.0
    %325 = vmatpush1.msra.mxu0 0.0
    %326 = vmatprep.subr.mxu0 0.0
    %327 = vmatpush1.msra.mxu0 0.0
    %328 = vmatprep.subr.mxu0 0.0
    %329 = vmatpush1.msra.mxu0 0.0
    %330 = vmatprep.subr.mxu0 0.0
    %331 = vmatpush1.msra.mxu0 0.0
    %332 = vmatprep.subr.mxu0 0.0
    %333 = vmatpush1.msra.mxu0 0.0
    %334 = vmatprep.subr.mxu0 0.0
    %335 = vmatpush1.msra.mxu0 0.0
    %336 = vmatprep.subr.mxu0 0.0
    %337 = vmatpush1.msra.mxu0 0.0
    %338 = vmatprep.subr.mxu0 0.0
    %339 = vmatpush1.msra.mxu0 0.0
    %340 = vmatprep.subr.mxu0 0.0
    %341 = vmatpush1.msra.mxu0 0.0
    %342 = vmatprep.subr.mxu0 0.0
    %343 = vmatpush1.msra.mxu0 0.0
    %344 = vmatprep.mubr.f32.mxu0 0.0
    %v345 = vand.u32 %v85, 4294901760
    %346 = vmatmul.mubr.f32.gmra.mrb[0].mxu0 %v345
    %v347 = vpop.f32.mrb[0].mxu0
    %v348 = vadd.f32 %v189, %v347
    %v349 = vpop.f32.mrb[0].mxu0
    %v350 = vadd.f32 %v191, %v349
    %351 = vmatprep.mubr.f32.mxu0 0.0
    %v352 = vand.u32 %v88, 4294901760
    %353 = vmatmul.mubr.f32.gmra.mrb[0].mxu0 %v352
    %v354 = vpop.f32.mrb[0].mxu0
    %v355 = vadd.f32 %v200, %v354
    %v356 = vpop.f32.mrb[0].mxu0
    %v357 = vadd.f32 %v202, %v356
    %358 = vmatprep.mubr.f32.mxu0 0.0
    %v359 = vand.u32 %v91, 4294901760
    %360 = vmatmul.mubr.f32.gmra.mrb[0].mxu0 %v359
    %v361 = vpop.f32.mrb[0].mxu0
    %v362 = vadd.f32 %v211, %v361
    %v363 = vpop.f32.mrb[0].mxu0
    %v364 = vadd.f32 %v213, %v363
    %365 = vmatprep.mubr.f32.mxu0 0.0
    %v366 = vand.u32 %v94, 4294901760
    %367 = vmatmul.mubr.f32.gmra.mrb[0].mxu0 %v366
    %v368 = vpop.f32.mrb[0].mxu0
    %v369 = vadd.f32 %v222, %v368
    %v370 = vpop.f32.mrb[0].mxu0
    %v371 = vadd.f32 %v224, %v370
    %372 = vmatprep.mubr.f32.mxu0 0.0
    %v373 = vand.u32 %v97, 4294901760
    %374 = vmatmul.mubr.f32.gmra.mrb[0].mxu0 %v373
    %v375 = vpop.f32.mrb[0].mxu0
    %v376 = vadd.f32 %v233, %v375
    %v377 = vpop.f32.mrb[0].mxu0
    %v378 = vadd.f32 %v235, %v377
    %379 = vmatprep.mubr.f32.mxu0 0.0
    %v380 = vand.u32 %v100, 4294901760
    %381 = vmatmul.mubr.f32.gmra.mrb[0].mxu0 %v380
    %v382 = vpop.f32.mrb[0].mxu0
    %v383 = vadd.f32 %v244, %v382
    %v384 = vpop.f32.mrb[0].mxu0
    %v385 = vadd.f32 %v246, %v384
    %386 = vmatprep.mubr.f32.mxu0 0.0
    %v387 = vand.u32 %v103, 4294901760
    %388 = vmatmul.mubr.f32.gmra.mrb[0].mxu0 %v387
    %v389 = vpop.f32.mrb[0].mxu0
    %v390 = vadd.f32 %v255, %v389
    %v391 = vpop.f32.mrb[0].mxu0
    %v392 = vadd.f32 %v257, %v391
    %393 = vmatprep.mubr.f32.mxu0 0.0
    %v394 = vand.u32 %v106, 4294901760
    %395 = vmatmul.mubr.f32.gmra.mrb[0].mxu0 %v394
    %v396 = vpop.f32.mrb[0].mxu0
    %v397 = vadd.f32 %v266, %v396
    %v398 = vpop.f32.mrb[0].mxu0
    %v399 = vadd.f32 %v268, %v398
    %400 = vdwg.mxu0
    %v401 = vand.u32 %v111, 4294901760
    %v402 = vsub.f32 %v111, %v401
    %403 = vmatprep.subr.mxu0 %v402
    %v404 = vand.u32 %v109, 4294901760
    %v405 = vsub.f32 %v109, %v404
    %406 = vmatpush1.msra.mxu0 %v405
    %407 = vmatprep.subr.mxu0 0.0
    %408 = vmatpush1.msra.mxu0 0.0
    %409 = vmatprep.subr.mxu0 0.0
    %410 = vmatpush1.msra.mxu0 0.0
    %411 = vmatprep.subr.mxu0 0.0
    %412 = vmatpush1.msra.mxu0 0.0
    %413 = vmatprep.subr.mxu0 0.0
    %414 = vmatpush1.msra.mxu0 0.0
    %415 = vmatprep.subr.mxu0 0.0
    %416 = vmatpush1.msra.mxu0 0.0
    %417 = vmatprep.subr.mxu0 0.0
    %418 = vmatpush1.msra.mxu0 0.0
    %419 = vmatprep.subr.mxu0 0.0
    %420 = vmatpush1.msra.mxu0 0.0
    %421 = vmatprep.subr.mxu0 0.0
    %422 = vmatpush1.msra.mxu0 0.0
    %423 = vmatprep.subr.mxu0 0.0
    %424 = vmatpush1.msra.mxu0 0.0
    %425 = vmatprep.subr.mxu0 0.0
    %426 = vmatpush1.msra.mxu0 0.0
    %427 = vmatprep.subr.mxu0 0.0
    %428 = vmatpush1.msra.mxu0 0.0
    %429 = vmatprep.subr.mxu0 0.0
    %430 = vmatpush1.msra.mxu0 0.0
    %431 = vmatprep.subr.mxu0 0.0
    %432 = vmatpush1.msra.mxu0 0.0
    %433 = vmatprep.subr.mxu0 0.0
    %434 = vmatpush1.msra.mxu0 0.0
    %435 = vmatprep.subr.mxu0 0.0
    %436 = vmatpush1.msra.mxu0 0.0
    %437 = vmatprep.subr.mxu0 0.0
    %438 = vmatpush1.msra.mxu0 0.0
    %439 = vmatprep.subr.mxu0 0.0
    %440 = vmatpush1.msra.mxu0 0.0
    %441 = vmatprep.subr.mxu0 0.0
    %442 = vmatpush1.msra.mxu0 0.0
    %443 = vmatprep.subr.mxu0 0.0
    %444 = vmatpush1.msra.mxu0 0.0
    %445 = vmatprep.subr.mxu0 0.0
    %446 = vmatpush1.msra.mxu0 0.0
    %447 = vmatprep.subr.mxu0 0.0
    %448 = vmatpush1.msra.mxu0 0.0
    %449 = vmatprep.subr.mxu0 0.0
    %450 = vmatpush1.msra.mxu0 0.0
    %451 = vmatprep.subr.mxu0 0.0
    %452 = vmatpush1.msra.mxu0 0.0
    %453 = vmatprep.subr.mxu0 0.0
    %454 = vmatpush1.msra.mxu0 0.0
    %455 = vmatprep.subr.mxu0 0.0
    %456 = vmatpush1.msra.mxu0 0.0
    %457 = vmatprep.subr.mxu0 0.0
    %458 = vmatpush1.msra.mxu0 0.0
    %459 = vmatprep.subr.mxu0 0.0
    %460 = vmatpush1.msra.mxu0 0.0
    %461 = vmatprep.subr.mxu0 0.0
    %462 = vmatpush1.msra.mxu0 0.0
    %463 = vmatprep.subr.mxu0 0.0
    %464 = vmatpush1.msra.mxu0 0.0
    %465 = vmatprep.subr.mxu0 0.0
    %466 = vmatpush1.msra.mxu0 0.0
    %467 = vmatprep.subr.mxu0 0.0
    %468 = vmatpush1.msra.mxu0 0.0
    %469 = vmatprep.mubr.f32.mxu0 0.0
    %v470 = vand.u32 %v85, 4294901760
    %v471 = vsub.f32 %v85, %v470
    %472 = vmatmul.mubr.f32.gmra.mrb[0].mxu0 %v471
    %v473 = vpop.f32.mrb[0].mxu0
    %v474 = vadd.f32 %v348, %v473
    %v475 = vpop.f32.mrb[0].mxu0
    %v476 = vadd.f32 %v350, %v475
    %477 = vmatprep.mubr.f32.mxu0 0.0
    %v478 = vand.u32 %v88, 4294901760
    %v479 = vsub.f32 %v88, %v478
    %480 = vmatmul.mubr.f32.gmra.mrb[0].mxu0 %v479
    %v481 = vpop.f32.mrb[0].mxu0
    %v482 = vadd.f32 %v355, %v481
    %v483 = vpop.f32.mrb[0].mxu0
    %v484 = vadd.f32 %v357, %v483
    %485 = vmatprep.mubr.f32.mxu0 0.0
    %v486 = vand.u32 %v91, 4294901760
    %v487 = vsub.f32 %v91, %v486
    %488 = vmatmul.mubr.f32.gmra.mrb[0].mxu0 %v487
    %v489 = vpop.f32.mrb[0].mxu0
    %v490 = vadd.f32 %v362, %v489
    %v491 = vpop.f32.mrb[0].mxu0
    %v492 = vadd.f32 %v364, %v491
    %493 = vmatprep.mubr.f32.mxu0 0.0
    %v494 = vand.u32 %v94, 4294901760
    %v495 = vsub.f32 %v94, %v494
    %496 = vmatmul.mubr.f32.gmra.mrb[0].mxu0 %v495
    %v497 = vpop.f32.mrb[0].mxu0
    %v498 = vadd.f32 %v369, %v497
    %v499 = vpop.f32.mrb[0].mxu0
    %v500 = vadd.f32 %v371, %v499
    %501 = vmatprep.mubr.f32.mxu0 0.0
    %v502 = vand.u32 %v97, 4294901760
    %v503 = vsub.f32 %v97, %v502
    %504 = vmatmul.mubr.f32.gmra.mrb[0].mxu0 %v503
    %v505 = vpop.f32.mrb[0].mxu0
    %v506 = vadd.f32 %v376, %v505
    %v507 = vpop.f32.mrb[0].mxu0
    %v508 = vadd.f32 %v378, %v507
    %509 = vmatprep.mubr.f32.mxu0 0.0
    %v510 = vand.u32 %v100, 4294901760
    %v511 = vsub.f32 %v100, %v510
    %512 = vmatmul.mubr.f32.gmra.mrb[0].mxu0 %v511
    %v513 = vpop.f32.mrb[0].mxu0
    %v514 = vadd.f32 %v383, %v513
    %v515 = vpop.f32.mrb[0].mxu0
    %v516 = vadd.f32 %v385, %v515
    %517 = vmatprep.mubr.f32.mxu0 0.0
    %v518 = vand.u32 %v103, 4294901760
    %v519 = vsub.f32 %v103, %v518
    %520 = vmatmul.mubr.f32.gmra.mrb[0].mxu0 %v519
    %v521 = vpop.f32.mrb[0].mxu0
    %v522 = vadd.f32 %v390, %v521
    %v523 = vpop.f32.mrb[0].mxu0
    %v524 = vadd.f32 %v392, %v523
    %525 = vmatprep.mubr.f32.mxu0 0.0
    %v526 = vand.u32 %v106, 4294901760
    %v527 = vsub.f32 %v106, %v526
    %528 = vmatmul.mubr.f32.gmra.mrb[0].mxu0 %v527
    %v529 = vpop.f32.mrb[0].mxu0
    %v530 = vadd.f32 %v397, %v529
    %v531 = vpop.f32.mrb[0].mxu0
    %v532 = vadd.f32 %v399, %v531
    %533 = vdwg.mxu0
    %v534 = vand.u32 %v111, 4294901760
    %535 = vmatprep.subr.mxu0 %v534
    %v536 = vand.u32 %v109, 4294901760
    %537 = vmatpush1.msra.mxu0 %v536
    %538 = vmatprep.subr.mxu0 0.0
    %539 = vmatpush1.msra.mxu0 0.0
    %540 = vmatprep.subr.mxu0 0.0
    %541 = vmatpush1.msra.mxu0 0.0
    %542 = vmatprep.subr.mxu0 0.0
    %543 = vmatpush1.msra.mxu0 0.0
    %544 = vmatprep.subr.mxu0 0.0
    %545 = vmatpush1.msra.mxu0 0.0
    %546 = vmatprep.subr.mxu0 0.0
    %547 = vmatpush1.msra.mxu0 0.0
    %548 = vmatprep.subr.mxu0 0.0
    %549 = vmatpush1.msra.mxu0 0.0
    %550 = vmatprep.subr.mxu0 0.0
    %551 = vmatpush1.msra.mxu0 0.0
    %552 = vmatprep.subr.mxu0 0.0
    %553 = vmatpush1.msra.mxu0 0.0
    %554 = vmatprep.subr.mxu0 0.0
    %555 = vmatpush1.msra.mxu0 0.0
    %556 = vmatprep.subr.mxu0 0.0
    %557 = vmatpush1.msra.mxu0 0.0
    %558 = vmatprep.subr.mxu0 0.0
    %559 = vmatpush1.msra.mxu0 0.0
    %560 = vmatprep.subr.mxu0 0.0
    %561 = vmatpush1.msra.mxu0 0.0
    %562 = vmatprep.subr.mxu0 0.0
    %563 = vmatpush1.msra.mxu0 0.0
    %564 = vmatprep.subr.mxu0 0.0
    %565 = vmatpush1.msra.mxu0 0.0
    %566 = vmatprep.subr.mxu0 0.0
    %567 = vmatpush1.msra.mxu0 0.0
    %568 = vmatprep.subr.mxu0 0.0
    %569 = vmatpush1.msra.mxu0 0.0
    %570 = vmatprep.subr.mxu0 0.0
    %571 = vmatpush1.msra.mxu0 0.0
    %572 = vmatprep.subr.mxu0 0.0
    %573 = vmatpush1.msra.mxu0 0.0
    %574 = vmatprep.subr.mxu0 0.0
    %575 = vmatpush1.msra.mxu0 0.0
    %576 = vmatprep.subr.mxu0 0.0
    %577 = vmatpush1.msra.mxu0 0.0
    %578 = vmatprep.subr.mxu0 0.0
    %579 = vmatpush1.msra.mxu0 0.0
    %580 = vmatprep.subr.mxu0 0.0
    %581 = vmatpush1.msra.mxu0 0.0
    %582 = vmatprep.subr.mxu0 0.0
    %583 = vmatpush1.msra.mxu0 0.0
    %584 = vmatprep.subr.mxu0 0.0
    %585 = vmatpush1.msra.mxu0 0.0
    %586 = vmatprep.subr.mxu0 0.0
    %587 = vmatpush1.msra.mxu0 0.0
    %588 = vmatprep.subr.mxu0 0.0
    %589 = vmatpush1.msra.mxu0 0.0
    %590 = vmatprep.subr.mxu0 0.0
    %591 = vmatpush1.msra.mxu0 0.0
    %592 = vmatprep.subr.mxu0 0.0
    %593 = vmatpush1.msra.mxu0 0.0
    %594 = vmatprep.subr.mxu0 0.0
    %595 = vmatpush1.msra.mxu0 0.0
    %596 = vmatprep.subr.mxu0 0.0
    %597 = vmatpush1.msra.mxu0 0.0
    %598 = vmatprep.subr.mxu0 0.0
    %599 = vmatpush1.msra.mxu0 0.0
    %600 = vmatprep.mubr.f32.mxu0 0.0
    %v601 = vand.u32 %v85, 4294901760
    %v602 = vsub.f32 %v85, %v601
    %v603 = vand.u32 %v602, 4294901760
    %604 = vmatmul.mubr.f32.gmra.mrb[0].mxu0 %v603
    %v605 = vpop.f32.mrb[0].mxu0
    %v606 = vadd.f32 %v474, %v605
    %v607 = vpop.f32.mrb[0].mxu0
    %v608 = vadd.f32 %v476, %v607
    %609 = vmatprep.mubr.f32.mxu0 0.0
    %v610 = vand.u32 %v88, 4294901760
    %v611 = vsub.f32 %v88, %v610
    %v612 = vand.u32 %v611, 4294901760
    %613 = vmatmul.mubr.f32.gmra.mrb[0].mxu0 %v612
    %v614 = vpop.f32.mrb[0].mxu0
    %v615 = vadd.f32 %v482, %v614
    %v616 = vpop.f32.mrb[0].mxu0
    %v617 = vadd.f32 %v484, %v616
    %618 = vmatprep.mubr.f32.mxu0 0.0
    %v619 = vand.u32 %v91, 4294901760
    %v620 = vsub.f32 %v91, %v619
    %v621 = vand.u32 %v620, 4294901760
    %622 = vmatmul.mubr.f32.gmra.mrb[0].mxu0 %v621
    %v623 = vpop.f32.mrb[0].mxu0
    %v624 = vadd.f32 %v490, %v623
    %v625 = vpop.f32.mrb[0].mxu0
    %v626 = vadd.f32 %v492, %v625
    %627 = vmatprep.mubr.f32.mxu0 0.0
    %v628 = vand.u32 %v94, 4294901760
    %v629 = vsub.f32 %v94, %v628
    %v630 = vand.u32 %v629, 4294901760
    %631 = vmatmul.mubr.f32.gmra.mrb[0].mxu0 %v630
    %v632 = vpop.f32.mrb[0].mxu0
    %v633 = vadd.f32 %v498, %v632
    %v634 = vpop.f32.mrb[0].mxu0
    %v635 = vadd.f32 %v500, %v634
    %636 = vmatprep.mubr.f32.mxu0 0.0
    %v637 = vand.u32 %v97, 4294901760
    %v638 = vsub.f32 %v97, %v637
    %v639 = vand.u32 %v638, 4294901760
    %640 = vmatmul.mubr.f32.gmra.mrb[0].mxu0 %v639
    %v641 = vpop.f32.mrb[0].mxu0
    %v642 = vadd.f32 %v506, %v641
    %v643 = vpop.f32.mrb[0].mxu0
    %v644 = vadd.f32 %v508, %v643
    %645 = vmatprep.mubr.f32.mxu0 0.0
    %v646 = vand.u32 %v100, 4294901760
    %v647 = vsub.f32 %v100, %v646
    %v648 = vand.u32 %v647, 4294901760
    %649 = vmatmul.mubr.f32.gmra.mrb[0].mxu0 %v648
    %v650 = vpop.f32.mrb[0].mxu0
    %v651 = vadd.f32 %v514, %v650
    %v652 = vpop.f32.mrb[0].mxu0
    %v653 = vadd.f32 %v516, %v652
    %654 = vmatprep.mubr.f32.mxu0 0.0
    %v655 = vand.u32 %v103, 4294901760
    %v656 = vsub.f32 %v103, %v655
    %v657 = vand.u32 %v656, 4294901760
    %658 = vmatmul.mubr.f32.gmra.mrb[0].mxu0 %v657
    %v659 = vpop.f32.mrb[0].mxu0
    %v660 = vadd.f32 %v522, %v659
    %v661 = vpop.f32.mrb[0].mxu0
    %v662 = vadd.f32 %v524, %v661
    %663 = vmatprep.mubr.f32.mxu0 0.0
    %v664 = vand.u32 %v106, 4294901760
    %v665 = vsub.f32 %v106, %v664
    %v666 = vand.u32 %v665, 4294901760
    %667 = vmatmul.mubr.f32.gmra.mrb[0].mxu0 %v666
    %v668 = vpop.f32.mrb[0].mxu0
    %v669 = vadd.f32 %v530, %v668
    %v670 = vpop.f32.mrb[0].mxu0
    %v671 = vadd.f32 %v532, %v670
    %672 = vdwg.mxu0
    %v673 = vand.u32 %v111, 4294901760
    %v674 = vsub.f32 %v111, %v673
    %v675 = vand.u32 %v674, 4294901760
    %676 = vmatprep.subr.mxu0 %v675
    %v677 = vand.u32 %v109, 4294901760
    %v678 = vsub.f32 %v109, %v677
    %v679 = vand.u32 %v678, 4294901760
    %680 = vmatpush1.msra.mxu0 %v679
    %681 = vmatprep.subr.mxu0 0.0
    %682 = vmatpush1.msra.mxu0 0.0
    %683 = vmatprep.subr.mxu0 0.0
    %684 = vmatpush1.msra.mxu0 0.0
    %685 = vmatprep.subr.mxu0 0.0
    %686 = vmatpush1.msra.mxu0 0.0
    %687 = vmatprep.subr.mxu0 0.0
    %688 = vmatpush1.msra.mxu0 0.0
    %689 = vmatprep.subr.mxu0 0.0
    %690 = vmatpush1.msra.mxu0 0.0
    %691 = vmatprep.subr.mxu0 0.0
    %692 = vmatpush1.msra.mxu0 0.0
    %693 = vmatprep.subr.mxu0 0.0
    %694 = vmatpush1.msra.mxu0 0.0
    %695 = vmatprep.subr.mxu0 0.0
    %696 = vmatpush1.msra.mxu0 0.0
    %697 = vmatprep.subr.mxu0 0.0
    %698 = vmatpush1.msra.mxu0 0.0
    %699 = vmatprep.subr.mxu0 0.0
    %700 = vmatpush1.msra.mxu0 0.0
    %701 = vmatprep.subr.mxu0 0.0
    %702 = vmatpush1.msra.mxu0 0.0
    %703 = vmatprep.subr.mxu0 0.0
    %704 = vmatpush1.msra.mxu0 0.0
    %705 = vmatprep.subr.mxu0 0.0
    %706 = vmatpush1.msra.mxu0 0.0
    %707 = vmatprep.subr.mxu0 0.0
    %708 = vmatpush1.msra.mxu0 0.0
    %709 = vmatprep.subr.mxu0 0.0
    %710 = vmatpush1.msra.mxu0 0.0
    %711 = vmatprep.subr.mxu0 0.0
    %712 = vmatpush1.msra.mxu0 0.0
    %713 = vmatprep.subr.mxu0 0.0
    %714 = vmatpush1.msra.mxu0 0.0
    %715 = vmatprep.subr.mxu0 0.0
    %716 = vmatpush1.msra.mxu0 0.0
    %717 = vmatprep.subr.mxu0 0.0
    %718 = vmatpush1.msra.mxu0 0.0
    %719 = vmatprep.subr.mxu0 0.0
    %720 = vmatpush1.msra.mxu0 0.0
    %721 = vmatprep.subr.mxu0 0.0
    %722 = vmatpush1.msra.mxu0 0.0
    %723 = vmatprep.subr.mxu0 0.0
    %724 = vmatpush1.msra.mxu0 0.0
    %725 = vmatprep.subr.mxu0 0.0
    %726 = vmatpush1.msra.mxu0 0.0
    %727 = vmatprep.subr.mxu0 0.0
    %728 = vmatpush1.msra.mxu0 0.0
    %729 = vmatprep.subr.mxu0 0.0
    %730 = vmatpush1.msra.mxu0 0.0
    %731 = vmatprep.subr.mxu0 0.0
    %732 = vmatpush1.msra.mxu0 0.0
    %733 = vmatprep.subr.mxu0 0.0
    %734 = vmatpush1.msra.mxu0 0.0
    %735 = vmatprep.subr.mxu0 0.0
    %736 = vmatpush1.msra.mxu0 0.0
    %737 = vmatprep.subr.mxu0 0.0
    %738 = vmatpush1.msra.mxu0 0.0
    %739 = vmatprep.subr.mxu0 0.0
    %740 = vmatpush1.msra.mxu0 0.0
    %741 = vmatprep.subr.mxu0 0.0
    %742 = vmatpush1.msra.mxu0 0.0
    %743 = vmatprep.mubr.f32.mxu0 0.0
    %v744 = vand.u32 %v85, 4294901760
    %745 = vmatmul.mubr.f32.gmra.mrb[0].mxu0 %v744
    %v746 = vpop.f32.mrb[0].mxu0
    %v747 = vadd.f32 %v606, %v746
    %v748 = vpop.f32.mrb[0].mxu0
    %v749 = vadd.f32 %v608, %v748
    %750 = vmatprep.mubr.f32.mxu0 0.0
    %v751 = vand.u32 %v88, 4294901760
    %752 = vmatmul.mubr.f32.gmra.mrb[0].mxu0 %v751
    %v753 = vpop.f32.mrb[0].mxu0
    %v754 = vadd.f32 %v615, %v753
    %v755 = vpop.f32.mrb[0].mxu0
    %v756 = vadd.f32 %v617, %v755
    %757 = vmatprep.mubr.f32.mxu0 0.0
    %v758 = vand.u32 %v91, 4294901760
    %759 = vmatmul.mubr.f32.gmra.mrb[0].mxu0 %v758
    %v760 = vpop.f32.mrb[0].mxu0
    %v761 = vadd.f32 %v624, %v760
    %v762 = vpop.f32.mrb[0].mxu0
    %v763 = vadd.f32 %v626, %v762
    %764 = vmatprep.mubr.f32.mxu0 0.0
    %v765 = vand.u32 %v94, 4294901760
    %766 = vmatmul.mubr.f32.gmra.mrb[0].mxu0 %v765
    %v767 = vpop.f32.mrb[0].mxu0
    %v768 = vadd.f32 %v633, %v767
    %v769 = vpop.f32.mrb[0].mxu0
    %v770 = vadd.f32 %v635, %v769
    %771 = vmatprep.mubr.f32.mxu0 0.0
    %v772 = vand.u32 %v97, 4294901760
    %773 = vmatmul.mubr.f32.gmra.mrb[0].mxu0 %v772
    %v774 = vpop.f32.mrb[0].mxu0
    %v775 = vadd.f32 %v642, %v774
    %v776 = vpop.f32.mrb[0].mxu0
    %v777 = vadd.f32 %v644, %v776
    %778 = vmatprep.mubr.f32.mxu0 0.0
    %v779 = vand.u32 %v100, 4294901760
    %780 = vmatmul.mubr.f32.gmra.mrb[0].mxu0 %v779
    %v781 = vpop.f32.mrb[0].mxu0
    %v782 = vadd.f32 %v651, %v781
    %v783 = vpop.f32.mrb[0].mxu0
    %v784 = vadd.f32 %v653, %v783
    %785 = vmatprep.mubr.f32.mxu0 0.0
    %v786 = vand.u32 %v103, 4294901760
    %787 = vmatmul.mubr.f32.gmra.mrb[0].mxu0 %v786
    %v788 = vpop.f32.mrb[0].mxu0
    %v789 = vadd.f32 %v660, %v788
    %v790 = vpop.f32.mrb[0].mxu0
    %v791 = vadd.f32 %v662, %v790
    %792 = vmatprep.mubr.f32.mxu0 0.0
    %v793 = vand.u32 %v106, 4294901760
    %794 = vmatmul.mubr.f32.gmra.mrb[0].mxu0 %v793
    %v795 = vpop.f32.mrb[0].mxu0
    %v796 = vadd.f32 %v669, %v795
    %v797 = vpop.f32.mrb[0].mxu0
    %v798 = vadd.f32 %v671, %v797
    %799 = vdwg.mxu0
    %v800 = vand.u32 %v111, 4294901760
    %801 = vmatprep.subr.mxu0 %v800
    %v802 = vand.u32 %v109, 4294901760
    %803 = vmatpush1.msra.mxu0 %v802
    %804 = vmatprep.subr.mxu0 0.0
    %805 = vmatpush1.msra.mxu0 0.0
    %806 = vmatprep.subr.mxu0 0.0
    %807 = vmatpush1.msra.mxu0 0.0
    %808 = vmatprep.subr.mxu0 0.0
    %809 = vmatpush1.msra.mxu0 0.0
    %810 = vmatprep.subr.mxu0 0.0
    %811 = vmatpush1.msra.mxu0 0.0
    %812 = vmatprep.subr.mxu0 0.0
    %813 = vmatpush1.msra.mxu0 0.0
    %814 = vmatprep.subr.mxu0 0.0
    %815 = vmatpush1.msra.mxu0 0.0
    %816 = vmatprep.subr.mxu0 0.0
    %817 = vmatpush1.msra.mxu0 0.0
    %818 = vmatprep.subr.mxu0 0.0
    %819 = vmatpush1.msra.mxu0 0.0
    %820 = vmatprep.subr.mxu0 0.0
    %821 = vmatpush1.msra.mxu0 0.0
    %822 = vmatprep.subr.mxu0 0.0
    %823 = vmatpush1.msra.mxu0 0.0
    %824 = vmatprep.subr.mxu0 0.0
    %825 = vmatpush1.msra.mxu0 0.0
    %826 = vmatprep.subr.mxu0 0.0
    %827 = vmatpush1.msra.mxu0 0.0
    %828 = vmatprep.subr.mxu0 0.0
    %829 = vmatpush1.msra.mxu0 0.0
    %830 = vmatprep.subr.mxu0 0.0
    %831 = vmatpush1.msra.mxu0 0.0
    %832 = vmatprep.subr.mxu0 0.0
    %833 = vmatpush1.msra.mxu0 0.0
    %834 = vmatprep.subr.mxu0 0.0
    %835 = vmatpush1.msra.mxu0 0.0
    %836 = vmatprep.subr.mxu0 0.0
    %837 = vmatpush1.msra.mxu0 0.0
    %838 = vmatprep.subr.mxu0 0.0
    %839 = vmatpush1.msra.mxu0 0.0
    %840 = vmatprep.subr.mxu0 0.0
    %841 = vmatpush1.msra.mxu0 0.0
    %842 = vmatprep.subr.mxu0 0.0
    %843 = vmatpush1.msra.mxu0 0.0
    %844 = vmatprep.subr.mxu0 0.0
    %845 = vmatpush1.msra.mxu0 0.0
    %846 = vmatprep.subr.mxu0 0.0
    %847 = vmatpush1.msra.mxu0 0.0
    %848 = vmatprep.subr.mxu0 0.0
    %849 = vmatpush1.msra.mxu0 0.0
    %850 = vmatprep.subr.mxu0 0.0
    %851 = vmatpush1.msra.mxu0 0.0
    %852 = vmatprep.subr.mxu0 0.0
    %853 = vmatpush1.msra.mxu0 0.0
    %854 = vmatprep.subr.mxu0 0.0
    %855 = vmatpush1.msra.mxu0 0.0
    %856 = vmatprep.subr.mxu0 0.0
    %857 = vmatpush1.msra.mxu0 0.0
    %858 = vmatprep.subr.mxu0 0.0
    %859 = vmatpush1.msra.mxu0 0.0
    %860 = vmatprep.subr.mxu0 0.0
    %861 = vmatpush1.msra.mxu0 0.0
    %862 = vmatprep.subr.mxu0 0.0
    %863 = vmatpush1.msra.mxu0 0.0
    %864 = vmatprep.subr.mxu0 0.0
    %865 = vmatpush1.msra.mxu0 0.0
    %866 = vmatprep.mubr.f32.mxu0 0.0
    %v867 = vand.u32 %v85, 4294901760
    %868 = vmatmul.mubr.f32.gmra.mrb[0].mxu0 %v867
    %v869 = vpop.f32.mrb[0].mxu0
    %v870 = vadd.f32 %v747, %v869
    %v871 = vpop.f32.mrb[0].mxu0
    %v872 = vadd.f32 %v749, %v871
    %873 = vmatprep.mubr.f32.mxu0 0.0
    %v874 = vand.u32 %v88, 4294901760
    %875 = vmatmul.mubr.f32.gmra.mrb[0].mxu0 %v874
    %v876 = vpop.f32.mrb[0].mxu0
    %v877 = vadd.f32 %v754, %v876
    %v878 = vpop.f32.mrb[0].mxu0
    %v879 = vadd.f32 %v756, %v878
    %880 = vmatprep.mubr.f32.mxu0 0.0
    %v881 = vand.u32 %v91, 4294901760
    %882 = vmatmul.mubr.f32.gmra.mrb[0].mxu0 %v881
    %v883 = vpop.f32.mrb[0].mxu0
    %v884 = vadd.f32 %v761, %v883
    %v885 = vpop.f32.mrb[0].mxu0
    %v886 = vadd.f32 %v763, %v885
    %887 = vmatprep.mubr.f32.mxu0 0.0
    %v888 = vand.u32 %v94, 4294901760
    %889 = vmatmul.mubr.f32.gmra.mrb[0].mxu0 %v888
    %v890 = vpop.f32.mrb[0].mxu0
    %v891 = vadd.f32 %v768, %v890
    %v892 = vpop.f32.mrb[0].mxu0
    %v893 = vadd.f32 %v770, %v892
    %894 = vmatprep.mubr.f32.mxu0 0.0
    %v895 = vand.u32 %v97, 4294901760
    %896 = vmatmul.mubr.f32.gmra.mrb[0].mxu0 %v895
    %v897 = vpop.f32.mrb[0].mxu0
    %v898 = vadd.f32 %v775, %v897
    %v899 = vpop.f32.mrb[0].mxu0
    %v900 = vadd.f32 %v777, %v899
    %901 = vmatprep.mubr.f32.mxu0 0.0
    %v902 = vand.u32 %v100, 4294901760
    %903 = vmatmul.mubr.f32.gmra.mrb[0].mxu0 %v902
    %v904 = vpop.f32.mrb[0].mxu0
    %v905 = vadd.f32 %v782, %v904
    %v906 = vpop.f32.mrb[0].mxu0
    %v907 = vadd.f32 %v784, %v906
    %908 = vmatprep.mubr.f32.mxu0 0.0
    %v909 = vand.u32 %v103, 4294901760
    %910 = vmatmul.mubr.f32.gmra.mrb[0].mxu0 %v909
    %v911 = vpop.f32.mrb[0].mxu0
    %v912 = vadd.f32 %v789, %v911
    %v913 = vpop.f32.mrb[0].mxu0
    %v914 = vadd.f32 %v791, %v913
    %915 = vmatprep.mubr.f32.mxu0 0.0
    %v916 = vand.u32 %v106, 4294901760
    %917 = vmatmul.mubr.f32.gmra.mrb[0].mxu0 %v916
    %v918 = vpop.f32.mrb[0].mxu0
    %v919 = vadd.f32 %v796, %v918
    %v920 = vpop.f32.mrb[0].mxu0
    %v921 = vadd.f32 %v798, %v920
    %922 = vdwg.mxu0
    %923 = vmatprep.subr.mxu0 0.0
    %v924 = vand.u32 %v113, 4294901760
    %925 = vmatpush1.msra.mxu0 %v924
    %926 = vmatprep.subr.mxu0 0.0
    %927 = vmatpush1.msra.mxu0 0.0
    %928 = vmatprep.subr.mxu0 0.0
    %929 = vmatpush1.msra.mxu0 0.0
    %930 = vmatprep.subr.mxu0 0.0
    %931 = vmatpush1.msra.mxu0 0.0
    %932 = vmatprep.subr.mxu0 0.0
    %933 = vmatpush1.msra.mxu0 0.0
    %934 = vmatprep.subr.mxu0 0.0
    %935 = vmatpush1.msra.mxu0 0.0
    %936 = vmatprep.subr.mxu0 0.0
    %937 = vmatpush1.msra.mxu0 0.0
    %938 = vmatprep.subr.mxu0 0.0
    %939 = vmatpush1.msra.mxu0 0.0
    %940 = vmatprep.subr.mxu0 0.0
    %941 = vmatpush1.msra.mxu0 0.0
    %942 = vmatprep.subr.mxu0 0.0
    %943 = vmatpush1.msra.mxu0 0.0
    %944 = vmatprep.subr.mxu0 0.0
    %945 = vmatpush1.msra.mxu0 0.0
    %946 = vmatprep.subr.mxu0 0.0
    %947 = vmatpush1.msra.mxu0 0.0
    %948 = vmatprep.subr.mxu0 0.0
    %949 = vmatpush1.msra.mxu0 0.0
    %950 = vmatprep.subr.mxu0 0.0
    %951 = vmatpush1.msra.mxu0 0.0
    %952 = vmatprep.subr.mxu0 0.0
    %953 = vmatpush1.msra.mxu0 0.0
    %954 = vmatprep.subr.mxu0 0.0
    %955 = vmatpush1.msra.mxu0 0.0
    %956 = vmatprep.subr.mxu0 0.0
    %957 = vmatpush1.msra.mxu0 0.0
    %958 = vmatprep.subr.mxu0 0.0
    %959 = vmatpush1.msra.mxu0 0.0
    %960 = vmatprep.subr.mxu0 0.0
    %961 = vmatpush1.msra.mxu0 0.0
    %962 = vmatprep.subr.mxu0 0.0
    %963 = vmatpush1.msra.mxu0 0.0
    %964 = vmatprep.subr.mxu0 0.0
    %965 = vmatpush1.msra.mxu0 0.0
    %966 = vmatprep.subr.mxu0 0.0
    %967 = vmatpush1.msra.mxu0 0.0
    %968 = vmatprep.subr.mxu0 0.0
    %969 = vmatpush1.msra.mxu0 0.0
    %970 = vmatprep.subr.mxu0 0.0
    %971 = vmatpush1.msra.mxu0 0.0
    %972 = vmatprep.subr.mxu0 0.0
    %973 = vmatpush1.msra.mxu0 0.0
    %974 = vmatprep.subr.mxu0 0.0
    %975 = vmatpush1.msra.mxu0 0.0
    %976 = vmatprep.subr.mxu0 0.0
    %977 = vmatpush1.msra.mxu0 0.0
    %978 = vmatprep.subr.mxu0 0.0
    %979 = vmatpush1.msra.mxu0 0.0
    %980 = vmatprep.subr.mxu0 0.0
    %981 = vmatpush1.msra.mxu0 0.0
    %982 = vmatprep.subr.mxu0 0.0
    %983 = vmatpush1.msra.mxu0 0.0
    %984 = vmatprep.subr.mxu0 0.0
    %985 = vmatpush1.msra.mxu0 0.0
    %986 = vmatprep.subr.mxu0 0.0
    %987 = vmatpush1.msra.mxu0 0.0
    %988 = vmatprep.mubr.f32.mxu0 0.0
    %v989 = vand.u32 %v85, 4294901760
    %v990 = vsub.f32 %v85, %v989
    %v991 = vand.u32 %v990, 4294901760
    %v992 = vsub.f32 %v990, %v991
    %v993 = vand.u32 %v992, 4294901760
    %994 = vmatmul.mubr.f32.gmra.mrb[0].mxu0 %v993
    %v995 = vpop.f32.mrb[0].mxu0
    %v996 = vadd.f32 %v43, %v995
    %v997 = vpop.f32.mrb[0].mxu0
    %998 = vmatprep.mubr.f32.mxu0 0.0
    %v999 = vand.u32 %v88, 4294901760
    %v1000 = vsub.f32 %v88, %v999
    %v1001 = vand.u32 %v1000, 4294901760
    %v1002 = vsub.f32 %v1000, %v1001
    %v1003 = vand.u32 %v1002, 4294901760
    %1004 = vmatmul.mubr.f32.gmra.mrb[0].mxu0 %v1003
    %v1005 = vpop.f32.mrb[0].mxu0
    %v1006 = vadd.f32 %v48, %v1005
    %v1007 = vpop.f32.mrb[0].mxu0
    %1008 = vmatprep.mubr.f32.mxu0 0.0
    %v1009 = vand.u32 %v91, 4294901760
    %v1010 = vsub.f32 %v91, %v1009
    %v1011 = vand.u32 %v1010, 4294901760
    %v1012 = vsub.f32 %v1010, %v1011
    %v1013 = vand.u32 %v1012, 4294901760
    %1014 = vmatmul.mubr.f32.gmra.mrb[0].mxu0 %v1013
    %v1015 = vpop.f32.mrb[0].mxu0
    %v1016 = vadd.f32 %v53, %v1015
    %v1017 = vpop.f32.mrb[0].mxu0
    %1018 = vmatprep.mubr.f32.mxu0 0.0
    %v1019 = vand.u32 %v94, 4294901760
    %v1020 = vsub.f32 %v94, %v1019
    %v1021 = vand.u32 %v1020, 4294901760
    %v1022 = vsub.f32 %v1020, %v1021
    %v1023 = vand.u32 %v1022, 4294901760
    %1024 = vmatmul.mubr.f32.gmra.mrb[0].mxu0 %v1023
    %v1025 = vpop.f32.mrb[0].mxu0
    %v1026 = vadd.f32 %v58, %v1025
    %v1027 = vpop.f32.mrb[0].mxu0
    %1028 = vmatprep.mubr.f32.mxu0 0.0
    %v1029 = vand.u32 %v97, 4294901760
    %v1030 = vsub.f32 %v97, %v1029
    %v1031 = vand.u32 %v1030, 4294901760
    %v1032 = vsub.f32 %v1030, %v1031
    %v1033 = vand.u32 %v1032, 4294901760
    %1034 = vmatmul.mubr.f32.gmra.mrb[0].mxu0 %v1033
    %v1035 = vpop.f32.mrb[0].mxu0
    %v1036 = vadd.f32 %v63, %v1035
    %v1037 = vpop.f32.mrb[0].mxu0
    %1038 = vmatprep.mubr.f32.mxu0 0.0
    %v1039 = vand.u32 %v100, 4294901760
    %v1040 = vsub.f32 %v100, %v1039
    %v1041 = vand.u32 %v1040, 4294901760
    %v1042 = vsub.f32 %v1040, %v1041
    %v1043 = vand.u32 %v1042, 4294901760
    %1044 = vmatmul.mubr.f32.gmra.mrb[0].mxu0 %v1043
    %v1045 = vpop.f32.mrb[0].mxu0
    %v1046 = vadd.f32 %v68, %v1045
    %v1047 = vpop.f32.mrb[0].mxu0
    %1048 = vmatprep.mubr.f32.mxu0 0.0
    %v1049 = vand.u32 %v103, 4294901760
    %v1050 = vsub.f32 %v103, %v1049
    %v1051 = vand.u32 %v1050, 4294901760
    %v1052 = vsub.f32 %v1050, %v1051
    %v1053 = vand.u32 %v1052, 4294901760
    %1054 = vmatmul.mubr.f32.gmra.mrb[0].mxu0 %v1053
    %v1055 = vpop.f32.mrb[0].mxu0
    %v1056 = vadd.f32 %v73, %v1055
    %v1057 = vpop.f32.mrb[0].mxu0
    %1058 = vmatprep.mubr.f32.mxu0 0.0
    %v1059 = vand.u32 %v106, 4294901760
    %v1060 = vsub.f32 %v106, %v1059
    %v1061 = vand.u32 %v1060, 4294901760
    %v1062 = vsub.f32 %v1060, %v1061
    %v1063 = vand.u32 %v1062, 4294901760
    %1064 = vmatmul.mubr.f32.gmra.mrb[0].mxu0 %v1063
    %v1065 = vpop.f32.mrb[0].mxu0
    %v1066 = vadd.f32 %v78, %v1065
    %v1067 = vpop.f32.mrb[0].mxu0
    %1068 = vdwg.mxu0
    %1069 = vmatprep.subr.mxu0 0.0
    %v1070 = vand.u32 %v113, 4294901760
    %v1071 = vsub.f32 %v113, %v1070
    %v1072 = vand.u32 %v1071, 4294901760
    %v1073 = vsub.f32 %v1071, %v1072
    %v1074 = vand.u32 %v1073, 4294901760
    %1075 = vmatpush1.msra.mxu0 %v1074
    %1076 = vmatprep.subr.mxu0 0.0
    %1077 = vmatpush1.msra.mxu0 0.0
    %1078 = vmatprep.subr.mxu0 0.0
    %1079 = vmatpush1.msra.mxu0 0.0
    %1080 = vmatprep.subr.mxu0 0.0
    %1081 = vmatpush1.msra.mxu0 0.0
    %1082 = vmatprep.subr.mxu0 0.0
    %1083 = vmatpush1.msra.mxu0 0.0
    %1084 = vmatprep.subr.mxu0 0.0
    %1085 = vmatpush1.msra.mxu0 0.0
    %1086 = vmatprep.subr.mxu0 0.0
    %1087 = vmatpush1.msra.mxu0 0.0
    %1088 = vmatprep.subr.mxu0 0.0
    %1089 = vmatpush1.msra.mxu0 0.0
    %1090 = vmatprep.subr.mxu0 0.0
    %1091 = vmatpush1.msra.mxu0 0.0
    %1092 = vmatprep.subr.mxu0 0.0
    %1093 = vmatpush1.msra.mxu0 0.0
    %1094 = vmatprep.subr.mxu0 0.0
    %1095 = vmatpush1.msra.mxu0 0.0
    %1096 = vmatprep.subr.mxu0 0.0
    %1097 = vmatpush1.msra.mxu0 0.0
    %1098 = vmatprep.subr.mxu0 0.0
    %1099 = vmatpush1.msra.mxu0 0.0
    %1100 = vmatprep.subr.mxu0 0.0
    %1101 = vmatpush1.msra.mxu0 0.0
    %1102 = vmatprep.subr.mxu0 0.0
    %1103 = vmatpush1.msra.mxu0 0.0
    %1104 = vmatprep.subr.mxu0 0.0
    %1105 = vmatpush1.msra.mxu0 0.0
    %1106 = vmatprep.subr.mxu0 0.0
    %1107 = vmatpush1.msra.mxu0 0.0
    %1108 = vmatprep.subr.mxu0 0.0
    %1109 = vmatpush1.msra.mxu0 0.0
    %1110 = vmatprep.subr.mxu0 0.0
    %1111 = vmatpush1.msra.mxu0 0.0
    %1112 = vmatprep.subr.mxu0 0.0
    %1113 = vmatpush1.msra.mxu0 0.0
    %1114 = vmatprep.subr.mxu0 0.0
    %1115 = vmatpush1.msra.mxu0 0.0
    %1116 = vmatprep.subr.mxu0 0.0
    %1117 = vmatpush1.msra.mxu0 0.0
    %1118 = vmatprep.subr.mxu0 0.0
    %1119 = vmatpush1.msra.mxu0 0.0
    %1120 = vmatprep.subr.mxu0 0.0
    %1121 = vmatpush1.msra.mxu0 0.0
    %1122 = vmatprep.subr.mxu0 0.0
    %1123 = vmatpush1.msra.mxu0 0.0
    %1124 = vmatprep.subr.mxu0 0.0
    %1125 = vmatpush1.msra.mxu0 0.0
    %1126 = vmatprep.subr.mxu0 0.0
    %1127 = vmatpush1.msra.mxu0 0.0
    %1128 = vmatprep.subr.mxu0 0.0
    %1129 = vmatpush1.msra.mxu0 0.0
    %1130 = vmatprep.subr.mxu0 0.0
    %1131 = vmatpush1.msra.mxu0 0.0
    %1132 = vmatprep.subr.mxu0 0.0
    %1133 = vmatpush1.msra.mxu0 0.0
    %1134 = vmatprep.subr.mxu0 0.0
    %1135 = vmatpush1.msra.mxu0 0.0
    %1136 = vmatprep.subr.mxu0 0.0
    %1137 = vmatpush1.msra.mxu0 0.0
    %1138 = vmatprep.mubr.f32.mxu0 0.0
    %v1139 = vand.u32 %v85, 4294901760
    %1140 = vmatmul.mubr.f32.gmra.mrb[0].mxu0 %v1139
    %v1141 = vpop.f32.mrb[0].mxu0
    %v1142 = vadd.f32 %v996, %v1141
    %v1143 = vpop.f32.mrb[0].mxu0
    %1144 = vmatprep.mubr.f32.mxu0 0.0
    %v1145 = vand.u32 %v88, 4294901760
    %1146 = vmatmul.mubr.f32.gmra.mrb[0].mxu0 %v1145
    %v1147 = vpop.f32.mrb[0].mxu0
    %v1148 = vadd.f32 %v1006, %v1147
    %v1149 = vpop.f32.mrb[0].mxu0
    %1150 = vmatprep.mubr.f32.mxu0 0.0
    %v1151 = vand.u32 %v91, 4294901760
    %1152 = vmatmul.mubr.f32.gmra.mrb[0].mxu0 %v1151
    %v1153 = vpop.f32.mrb[0].mxu0
    %v1154 = vadd.f32 %v1016, %v1153
    %v1155 = vpop.f32.mrb[0].mxu0
    %1156 = vmatprep.mubr.f32.mxu0 0.0
    %v1157 = vand.u32 %v94, 4294901760
    %1158 = vmatmul.mubr.f32.gmra.mrb[0].mxu0 %v1157
    %v1159 = vpop.f32.mrb[0].mxu0
    %v1160 = vadd.f32 %v1026, %v1159
    %v1161 = vpop.f32.mrb[0].mxu0
    %1162 = vmatprep.mubr.f32.mxu0 0.0
    %v1163 = vand.u32 %v97, 4294901760
    %1164 = vmatmul.mubr.f32.gmra.mrb[0].mxu0 %v1163
    %v1165 = vpop.f32.mrb[0].mxu0
    %v1166 = vadd.f32 %v1036, %v1165
    %v1167 = vpop.f32.mrb[0].mxu0
    %1168 = vmatprep.mubr.f32.mxu0 0.0
    %v1169 = vand.u32 %v100, 4294901760
    %1170 = vmatmul.mubr.f32.gmra.mrb[0].mxu0 %v1169
    %v1171 = vpop.f32.mrb[0].mxu0
    %v1172 = vadd.f32 %v1046, %v1171
    %v1173 = vpop.f32.mrb[0].mxu0
    %1174 = vmatprep.mubr.f32.mxu0 0.0
    %v1175 = vand.u32 %v103, 4294901760
    %1176 = vmatmul.mubr.f32.gmra.mrb[0].mxu0 %v1175
    %v1177 = vpop.f32.mrb[0].mxu0
    %v1178 = vadd.f32 %v1056, %v1177
    %v1179 = vpop.f32.mrb[0].mxu0
    %1180 = vmatprep.mubr.f32.mxu0 0.0
    %v1181 = vand.u32 %v106, 4294901760
    %1182 = vmatmul.mubr.f32.gmra.mrb[0].mxu0 %v1181
    %v1183 = vpop.f32.mrb[0].mxu0
    %v1184 = vadd.f32 %v1066, %v1183
    %v1185 = vpop.f32.mrb[0].mxu0
    %1186 = vdwg.mxu0
    %1187 = vmatprep.subr.mxu0 0.0
    %v1188 = vand.u32 %v113, 4294901760
    %v1189 = vsub.f32 %v113, %v1188
    %1190 = vmatpush1.msra.mxu0 %v1189
    %1191 = vmatprep.subr.mxu0 0.0
    %1192 = vmatpush1.msra.mxu0 0.0
    %1193 = vmatprep.subr.mxu0 0.0
    %1194 = vmatpush1.msra.mxu0 0.0
    %1195 = vmatprep.subr.mxu0 0.0
    %1196 = vmatpush1.msra.mxu0 0.0
    %1197 = vmatprep.subr.mxu0 0.0
    %1198 = vmatpush1.msra.mxu0 0.0
    %1199 = vmatprep.subr.mxu0 0.0
    %1200 = vmatpush1.msra.mxu0 0.0
    %1201 = vmatprep.subr.mxu0 0.0
    %1202 = vmatpush1.msra.mxu0 0.0
    %1203 = vmatprep.subr.mxu0 0.0
    %1204 = vmatpush1.msra.mxu0 0.0
    %1205 = vmatprep.subr.mxu0 0.0
    %1206 = vmatpush1.msra.mxu0 0.0
    %1207 = vmatprep.subr.mxu0 0.0
    %1208 = vmatpush1.msra.mxu0 0.0
    %1209 = vmatprep.subr.mxu0 0.0
    %1210 = vmatpush1.msra.mxu0 0.0
    %1211 = vmatprep.subr.mxu0 0.0
    %1212 = vmatpush1.msra.mxu0 0.0
    %1213 = vmatprep.subr.mxu0 0.0
    %1214 = vmatpush1.msra.mxu0 0.0
    %1215 = vmatprep.subr.mxu0 0.0
    %1216 = vmatpush1.msra.mxu0 0.0
    %1217 = vmatprep.subr.mxu0 0.0
    %1218 = vmatpush1.msra.mxu0 0.0
    %1219 = vmatprep.subr.mxu0 0.0
    %1220 = vmatpush1.msra.mxu0 0.0
    %1221 = vmatprep.subr.mxu0 0.0
    %1222 = vmatpush1.msra.mxu0 0.0
    %1223 = vmatprep.subr.mxu0 0.0
    %1224 = vmatpush1.msra.mxu0 0.0
    %1225 = vmatprep.subr.mxu0 0.0
    %1226 = vmatpush1.msra.mxu0 0.0
    %1227 = vmatprep.subr.mxu0 0.0
    %1228 = vmatpush1.msra.mxu0 0.0
    %1229 = vmatprep.subr.mxu0 0.0
    %1230 = vmatpush1.msra.mxu0 0.0
    %1231 = vmatprep.subr.mxu0 0.0
    %1232 = vmatpush1.msra.mxu0 0.0
    %1233 = vmatprep.subr.mxu0 0.0
    %1234 = vmatpush1.msra.mxu0 0.0
    %1235 = vmatprep.subr.mxu0 0.0
    %1236 = vmatpush1.msra.mxu0 0.0
    %1237 = vmatprep.subr.mxu0 0.0
    %1238 = vmatpush1.msra.mxu0 0.0
    %1239 = vmatprep.subr.mxu0 0.0
    %1240 = vmatpush1.msra.mxu0 0.0
    %1241 = vmatprep.subr.mxu0 0.0
    %1242 = vmatpush1.msra.mxu0 0.0
    %1243 = vmatprep.subr.mxu0 0.0
    %1244 = vmatpush1.msra.mxu0 0.0
    %1245 = vmatprep.subr.mxu0 0.0
    %1246 = vmatpush1.msra.mxu0 0.0
    %1247 = vmatprep.subr.mxu0 0.0
    %1248 = vmatpush1.msra.mxu0 0.0
    %1249 = vmatprep.subr.mxu0 0.0
    %1250 = vmatpush1.msra.mxu0 0.0
    %1251 = vmatprep.subr.mxu0 0.0
    %1252 = vmatpush1.msra.mxu0 0.0
    %1253 = vmatprep.mubr.f32.mxu0 0.0
    %v1254 = vand.u32 %v85, 4294901760
    %v1255 = vsub.f32 %v85, %v1254
    %1256 = vmatmul.mubr.f32.gmra.mrb[0].mxu0 %v1255
    %v1257 = vpop.f32.mrb[0].mxu0
    %v1258 = vadd.f32 %v1142, %v1257
    %v1259 = vpop.f32.mrb[0].mxu0
    %1260 = vmatprep.mubr.f32.mxu0 0.0
    %v1261 = vand.u32 %v88, 4294901760
    %v1262 = vsub.f32 %v88, %v1261
    %1263 = vmatmul.mubr.f32.gmra.mrb[0].mxu0 %v1262
    %v1264 = vpop.f32.mrb[0].mxu0
    %v1265 = vadd.f32 %v1148, %v1264
    %v1266 = vpop.f32.mrb[0].mxu0
    %1267 = vmatprep.mubr.f32.mxu0 0.0
    %v1268 = vand.u32 %v91, 4294901760
    %v1269 = vsub.f32 %v91, %v1268
    %1270 = vmatmul.mubr.f32.gmra.mrb[0].mxu0 %v1269
    %v1271 = vpop.f32.mrb[0].mxu0
    %v1272 = vadd.f32 %v1154, %v1271
    %v1273 = vpop.f32.mrb[0].mxu0
    %1274 = vmatprep.mubr.f32.mxu0 0.0
    %v1275 = vand.u32 %v94, 4294901760
    %v1276 = vsub.f32 %v94, %v1275
    %1277 = vmatmul.mubr.f32.gmra.mrb[0].mxu0 %v1276
    %v1278 = vpop.f32.mrb[0].mxu0
    %v1279 = vadd.f32 %v1160, %v1278
    %v1280 = vpop.f32.mrb[0].mxu0
    %1281 = vmatprep.mubr.f32.mxu0 0.0
    %v1282 = vand.u32 %v97, 4294901760
    %v1283 = vsub.f32 %v97, %v1282
    %1284 = vmatmul.mubr.f32.gmra.mrb[0].mxu0 %v1283
    %v1285 = vpop.f32.mrb[0].mxu0
    %v1286 = vadd.f32 %v1166, %v1285
    %v1287 = vpop.f32.mrb[0].mxu0
    %1288 = vmatprep.mubr.f32.mxu0 0.0
    %v1289 = vand.u32 %v100, 4294901760
    %v1290 = vsub.f32 %v100, %v1289
    %1291 = vmatmul.mubr.f32.gmra.mrb[0].mxu0 %v1290
    %v1292 = vpop.f32.mrb[0].mxu0
    %v1293 = vadd.f32 %v1172, %v1292
    %v1294 = vpop.f32.mrb[0].mxu0
    %1295 = vmatprep.mubr.f32.mxu0 0.0
    %v1296 = vand.u32 %v103, 4294901760
    %v1297 = vsub.f32 %v103, %v1296
    %1298 = vmatmul.mubr.f32.gmra.mrb[0].mxu0 %v1297
    %v1299 = vpop.f32.mrb[0].mxu0
    %v1300 = vadd.f32 %v1178, %v1299
    %v1301 = vpop.f32.mrb[0].mxu0
    %1302 = vmatprep.mubr.f32.mxu0 0.0
    %v1303 = vand.u32 %v106, 4294901760
    %v1304 = vsub.f32 %v106, %v1303
    %1305 = vmatmul.mubr.f32.gmra.mrb[0].mxu0 %v1304
    %v1306 = vpop.f32.mrb[0].mxu0
    %v1307 = vadd.f32 %v1184, %v1306
    %v1308 = vpop.f32.mrb[0].mxu0
    %1309 = vdwg.mxu0
    %1310 = vmatprep.subr.mxu0 0.0
    %v1311 = vand.u32 %v113, 4294901760
    %1312 = vmatpush1.msra.mxu0 %v1311
    %1313 = vmatprep.subr.mxu0 0.0
    %1314 = vmatpush1.msra.mxu0 0.0
    %1315 = vmatprep.subr.mxu0 0.0
    %1316 = vmatpush1.msra.mxu0 0.0
    %1317 = vmatprep.subr.mxu0 0.0
    %1318 = vmatpush1.msra.mxu0 0.0
    %1319 = vmatprep.subr.mxu0 0.0
    %1320 = vmatpush1.msra.mxu0 0.0
    %1321 = vmatprep.subr.mxu0 0.0
    %1322 = vmatpush1.msra.mxu0 0.0
    %1323 = vmatprep.subr.mxu0 0.0
    %1324 = vmatpush1.msra.mxu0 0.0
    %1325 = vmatprep.subr.mxu0 0.0
    %1326 = vmatpush1.msra.mxu0 0.0
    %1327 = vmatprep.subr.mxu0 0.0
    %1328 = vmatpush1.msra.mxu0 0.0
    %1329 = vmatprep.subr.mxu0 0.0
    %1330 = vmatpush1.msra.mxu0 0.0
    %1331 = vmatprep.subr.mxu0 0.0
    %1332 = vmatpush1.msra.mxu0 0.0
    %1333 = vmatprep.subr.mxu0 0.0
    %1334 = vmatpush1.msra.mxu0 0.0
    %1335 = vmatprep.subr.mxu0 0.0
    %1336 = vmatpush1.msra.mxu0 0.0
    %1337 = vmatprep.subr.mxu0 0.0
    %1338 = vmatpush1.msra.mxu0 0.0
    %1339 = vmatprep.subr.mxu0 0.0
    %1340 = vmatpush1.msra.mxu0 0.0
    %1341 = vmatprep.subr.mxu0 0.0
    %1342 = vmatpush1.msra.mxu0 0.0
    %1343 = vmatprep.subr.mxu0 0.0
    %1344 = vmatpush1.msra.mxu0 0.0
    %1345 = vmatprep.subr.mxu0 0.0
    %1346 = vmatpush1.msra.mxu0 0.0
    %1347 = vmatprep.subr.mxu0 0.0
    %1348 = vmatpush1.msra.mxu0 0.0
    %1349 = vmatprep.subr.mxu0 0.0
    %1350 = vmatpush1.msra.mxu0 0.0
    %1351 = vmatprep.subr.mxu0 0.0
    %1352 = vmatpush1.msra.mxu0 0.0
    %1353 = vmatprep.subr.mxu0 0.0
    %1354 = vmatpush1.msra.mxu0 0.0
    %1355 = vmatprep.subr.mxu0 0.0
    %1356 = vmatpush1.msra.mxu0 0.0
    %1357 = vmatprep.subr.mxu0 0.0
    %1358 = vmatpush1.msra.mxu0 0.0
    %1359 = vmatprep.subr.mxu0 0.0
    %1360 = vmatpush1.msra.mxu0 0.0
    %1361 = vmatprep.subr.mxu0 0.0
    %1362 = vmatpush1.msra.mxu0 0.0
    %1363 = vmatprep.subr.mxu0 0.0
    %1364 = vmatpush1.msra.mxu0 0.0
    %1365 = vmatprep.subr.mxu0 0.0
    %1366 = vmatpush1.msra.mxu0 0.0
    %1367 = vmatprep.subr.mxu0 0.0
    %1368 = vmatpush1.msra.mxu0 0.0
    %1369 = vmatprep.subr.mxu0 0.0
    %1370 = vmatpush1.msra.mxu0 0.0
    %1371 = vmatprep.subr.mxu0 0.0
    %1372 = vmatpush1.msra.mxu0 0.0
    %1373 = vmatprep.subr.mxu0 0.0
    %1374 = vmatpush1.msra.mxu0 0.0
    %1375 = vmatprep.mubr.f32.mxu0 0.0
    %v1376 = vand.u32 %v85, 4294901760
    %v1377 = vsub.f32 %v85, %v1376
    %v1378 = vand.u32 %v1377, 4294901760
    %1379 = vmatmul.mubr.f32.gmra.mrb[0].mxu0 %v1378
    %v1380 = vpop.f32.mrb[0].mxu0
    %v1381 = vadd.f32 %v1258, %v1380
    %v1382 = vpop.f32.mrb[0].mxu0
    %1383 = vmatprep.mubr.f32.mxu0 0.0
    %v1384 = vand.u32 %v88, 4294901760
    %v1385 = vsub.f32 %v88, %v1384
    %v1386 = vand.u32 %v1385, 4294901760
    %1387 = vmatmul.mubr.f32.gmra.mrb[0].mxu0 %v1386
    %v1388 = vpop.f32.mrb[0].mxu0
    %v1389 = vadd.f32 %v1265, %v1388
    %v1390 = vpop.f32.mrb[0].mxu0
    %1391 = vmatprep.mubr.f32.mxu0 0.0
    %v1392 = vand.u32 %v91, 4294901760
    %v1393 = vsub.f32 %v91, %v1392
    %v1394 = vand.u32 %v1393, 4294901760
    %1395 = vmatmul.mubr.f32.gmra.mrb[0].mxu0 %v1394
    %v1396 = vpop.f32.mrb[0].mxu0
    %v1397 = vadd.f32 %v1272, %v1396
    %v1398 = vpop.f32.mrb[0].mxu0
    %1399 = vmatprep.mubr.f32.mxu0 0.0
    %v1400 = vand.u32 %v94, 4294901760
    %v1401 = vsub.f32 %v94, %v1400
    %v1402 = vand.u32 %v1401, 4294901760
    %1403 = vmatmul.mubr.f32.gmra.mrb[0].mxu0 %v1402
    %v1404 = vpop.f32.mrb[0].mxu0
    %v1405 = vadd.f32 %v1279, %v1404
    %v1406 = vpop.f32.mrb[0].mxu0
    %1407 = vmatprep.mubr.f32.mxu0 0.0
    %v1408 = vand.u32 %v97, 4294901760
    %v1409 = vsub.f32 %v97, %v1408
    %v1410 = vand.u32 %v1409, 4294901760
    %1411 = vmatmul.mubr.f32.gmra.mrb[0].mxu0 %v1410
    %v1412 = vpop.f32.mrb[0].mxu0
    %v1413 = vadd.f32 %v1286, %v1412
    %v1414 = vpop.f32.mrb[0].mxu0
    %1415 = vmatprep.mubr.f32.mxu0 0.0
    %v1416 = vand.u32 %v100, 4294901760
    %v1417 = vsub.f32 %v100, %v1416
    %v1418 = vand.u32 %v1417, 4294901760
    %1419 = vmatmul.mubr.f32.gmra.mrb[0].mxu0 %v1418
    %v1420 = vpop.f32.mrb[0].mxu0
    %v1421 = vadd.f32 %v1293, %v1420
    %v1422 = vpop.f32.mrb[0].mxu0
    %1423 = vmatprep.mubr.f32.mxu0 0.0
    %v1424 = vand.u32 %v103, 4294901760
    %v1425 = vsub.f32 %v103, %v1424
    %v1426 = vand.u32 %v1425, 4294901760
    %1427 = vmatmul.mubr.f32.gmra.mrb[0].mxu0 %v1426
    %v1428 = vpop.f32.mrb[0].mxu0
    %v1429 = vadd.f32 %v1300, %v1428
    %v1430 = vpop.f32.mrb[0].mxu0
    %1431 = vmatprep.mubr.f32.mxu0 0.0
    %v1432 = vand.u32 %v106, 4294901760
    %v1433 = vsub.f32 %v106, %v1432
    %v1434 = vand.u32 %v1433, 4294901760
    %1435 = vmatmul.mubr.f32.gmra.mrb[0].mxu0 %v1434
    %v1436 = vpop.f32.mrb[0].mxu0
    %v1437 = vadd.f32 %v1307, %v1436
    %v1438 = vpop.f32.mrb[0].mxu0
    %1439 = vdwg.mxu0
    %1440 = vmatprep.subr.mxu0 0.0
    %v1441 = vand.u32 %v113, 4294901760
    %v1442 = vsub.f32 %v113, %v1441
    %v1443 = vand.u32 %v1442, 4294901760
    %1444 = vmatpush1.msra.mxu0 %v1443
    %1445 = vmatprep.subr.mxu0 0.0
    %1446 = vmatpush1.msra.mxu0 0.0
    %1447 = vmatprep.subr.mxu0 0.0
    %1448 = vmatpush1.msra.mxu0 0.0
    %1449 = vmatprep.subr.mxu0 0.0
    %1450 = vmatpush1.msra.mxu0 0.0
    %1451 = vmatprep.subr.mxu0 0.0
    %1452 = vmatpush1.msra.mxu0 0.0
    %1453 = vmatprep.subr.mxu0 0.0
    %1454 = vmatpush1.msra.mxu0 0.0
    %1455 = vmatprep.subr.mxu0 0.0
    %1456 = vmatpush1.msra.mxu0 0.0
    %1457 = vmatprep.subr.mxu0 0.0
    %1458 = vmatpush1.msra.mxu0 0.0
    %1459 = vmatprep.subr.mxu0 0.0
    %1460 = vmatpush1.msra.mxu0 0.0
    %1461 = vmatprep.subr.mxu0 0.0
    %1462 = vmatpush1.msra.mxu0 0.0
    %1463 = vmatprep.subr.mxu0 0.0
    %1464 = vmatpush1.msra.mxu0 0.0
    %1465 = vmatprep.subr.mxu0 0.0
    %1466 = vmatpush1.msra.mxu0 0.0
    %1467 = vmatprep.subr.mxu0 0.0
    %1468 = vmatpush1.msra.mxu0 0.0
    %1469 = vmatprep.subr.mxu0 0.0
    %1470 = vmatpush1.msra.mxu0 0.0
    %1471 = vmatprep.subr.mxu0 0.0
    %1472 = vmatpush1.msra.mxu0 0.0
    %1473 = vmatprep.subr.mxu0 0.0
    %1474 = vmatpush1.msra.mxu0 0.0
    %1475 = vmatprep.subr.mxu0 0.0
    %1476 = vmatpush1.msra.mxu0 0.0
    %1477 = vmatprep.subr.mxu0 0.0
    %1478 = vmatpush1.msra.mxu0 0.0
    %1479 = vmatprep.subr.mxu0 0.0
    %1480 = vmatpush1.msra.mxu0 0.0
    %1481 = vmatprep.subr.mxu0 0.0
    %1482 = vmatpush1.msra.mxu0 0.0
    %1483 = vmatprep.subr.mxu0 0.0
    %1484 = vmatpush1.msra.mxu0 0.0
    %1485 = vmatprep.subr.mxu0 0.0
    %1486 = vmatpush1.msra.mxu0 0.0
    %1487 = vmatprep.subr.mxu0 0.0
    %1488 = vmatpush1.msra.mxu0 0.0
    %1489 = vmatprep.subr.mxu0 0.0
    %1490 = vmatpush1.msra.mxu0 0.0
    %1491 = vmatprep.subr.mxu0 0.0
    %1492 = vmatpush1.msra.mxu0 0.0
    %1493 = vmatprep.subr.mxu0 0.0
    %1494 = vmatpush1.msra.mxu0 0.0
    %1495 = vmatprep.subr.mxu0 0.0
    %1496 = vmatpush1.msra.mxu0 0.0
    %1497 = vmatprep.subr.mxu0 0.0
    %1498 = vmatpush1.msra.mxu0 0.0
    %1499 = vmatprep.subr.mxu0 0.0
    %1500 = vmatpush1.msra.mxu0 0.0
    %1501 = vmatprep.subr.mxu0 0.0
    %1502 = vmatpush1.msra.mxu0 0.0
    %1503 = vmatprep.subr.mxu0 0.0
    %1504 = vmatpush1.msra.mxu0 0.0
    %1505 = vmatprep.subr.mxu0 0.0
    %1506 = vmatpush1.msra.mxu0 0.0
    %1507 = vmatprep.mubr.f32.mxu0 0.0
    %v1508 = vand.u32 %v85, 4294901760
    %1509 = vmatmul.mubr.f32.gmra.mrb[0].mxu0 %v1508
    %v1510 = vpop.f32.mrb[0].mxu0
    %v1511 = vadd.f32 %v1381, %v1510
    %v1512 = vpop.f32.mrb[0].mxu0
    %1513 = vmatprep.mubr.f32.mxu0 0.0
    %v1514 = vand.u32 %v88, 4294901760
    %1515 = vmatmul.mubr.f32.gmra.mrb[0].mxu0 %v1514
    %v1516 = vpop.f32.mrb[0].mxu0
    %v1517 = vadd.f32 %v1389, %v1516
    %v1518 = vpop.f32.mrb[0].mxu0
    %1519 = vmatprep.mubr.f32.mxu0 0.0
    %v1520 = vand.u32 %v91, 4294901760
    %1521 = vmatmul.mubr.f32.gmra.mrb[0].mxu0 %v1520
    %v1522 = vpop.f32.mrb[0].mxu0
    %v1523 = vadd.f32 %v1397, %v1522
    %v1524 = vpop.f32.mrb[0].mxu0
    %1525 = vmatprep.mubr.f32.mxu0 0.0
    %v1526 = vand.u32 %v94, 4294901760
    %1527 = vmatmul.mubr.f32.gmra.mrb[0].mxu0 %v1526
    %v1528 = vpop.f32.mrb[0].mxu0
    %v1529 = vadd.f32 %v1405, %v1528
    %v1530 = vpop.f32.mrb[0].mxu0
    %1531 = vmatprep.mubr.f32.mxu0 0.0
    %v1532 = vand.u32 %v97, 4294901760
    %1533 = vmatmul.mubr.f32.gmra.mrb[0].mxu0 %v1532
    %v1534 = vpop.f32.mrb[0].mxu0
    %v1535 = vadd.f32 %v1413, %v1534
    %v1536 = vpop.f32.mrb[0].mxu0
    %1537 = vmatprep.mubr.f32.mxu0 0.0
    %v1538 = vand.u32 %v100, 4294901760
    %1539 = vmatmul.mubr.f32.gmra.mrb[0].mxu0 %v1538
    %v1540 = vpop.f32.mrb[0].mxu0
    %v1541 = vadd.f32 %v1421, %v1540
    %v1542 = vpop.f32.mrb[0].mxu0
    %1543 = vmatprep.mubr.f32.mxu0 0.0
    %v1544 = vand.u32 %v103, 4294901760
    %1545 = vmatmul.mubr.f32.gmra.mrb[0].mxu0 %v1544
    %v1546 = vpop.f32.mrb[0].mxu0
    %v1547 = vadd.f32 %v1429, %v1546
    %v1548 = vpop.f32.mrb[0].mxu0
    %1549 = vmatprep.mubr.f32.mxu0 0.0
    %v1550 = vand.u32 %v106, 4294901760
    %1551 = vmatmul.mubr.f32.gmra.mrb[0].mxu0 %v1550
    %v1552 = vpop.f32.mrb[0].mxu0
    %v1553 = vadd.f32 %v1437, %v1552
    %v1554 = vpop.f32.mrb[0].mxu0
    %1555 = vdwg.mxu0
    %1556 = vmatprep.subr.mxu0 0.0
    %v1557 = vand.u32 %v113, 4294901760
    %1558 = vmatpush1.msra.mxu0 %v1557
    %1559 = vmatprep.subr.mxu0 0.0
    %1560 = vmatpush1.msra.mxu0 0.0
    %1561 = vmatprep.subr.mxu0 0.0
    %1562 = vmatpush1.msra.mxu0 0.0
    %1563 = vmatprep.subr.mxu0 0.0
    %1564 = vmatpush1.msra.mxu0 0.0
    %1565 = vmatprep.subr.mxu0 0.0
    %1566 = vmatpush1.msra.mxu0 0.0
    %1567 = vmatprep.subr.mxu0 0.0
    %1568 = vmatpush1.msra.mxu0 0.0
    %1569 = vmatprep.subr.mxu0 0.0
    %1570 = vmatpush1.msra.mxu0 0.0
    %1571 = vmatprep.subr.mxu0 0.0
    %1572 = vmatpush1.msra.mxu0 0.0
    %1573 = vmatprep.subr.mxu0 0.0
    %1574 = vmatpush1.msra.mxu0 0.0
    %1575 = vmatprep.subr.mxu0 0.0
    %1576 = vmatpush1.msra.mxu0 0.0
    %1577 = vmatprep.subr.mxu0 0.0
    %1578 = vmatpush1.msra.mxu0 0.0
    %1579 = vmatprep.subr.mxu0 0.0
    %1580 = vmatpush1.msra.mxu0 0.0
    %1581 = vmatprep.subr.mxu0 0.0
    %1582 = vmatpush1.msra.mxu0 0.0
    %1583 = vmatprep.subr.mxu0 0.0
    %1584 = vmatpush1.msra.mxu0 0.0
    %1585 = vmatprep.subr.mxu0 0.0
    %1586 = vmatpush1.msra.mxu0 0.0
    %1587 = vmatprep.subr.mxu0 0.0
    %1588 = vmatpush1.msra.mxu0 0.0
    %1589 = vmatprep.subr.mxu0 0.0
    %1590 = vmatpush1.msra.mxu0 0.0
    %1591 = vmatprep.subr.mxu0 0.0
    %1592 = vmatpush1.msra.mxu0 0.0
    %1593 = vmatprep.subr.mxu0 0.0
    %1594 = vmatpush1.msra.mxu0 0.0
    %1595 = vmatprep.subr.mxu0 0.0
    %1596 = vmatpush1.msra.mxu0 0.0
    %1597 = vmatprep.subr.mxu0 0.0
    %1598 = vmatpush1.msra.mxu0 0.0
    %1599 = vmatprep.subr.mxu0 0.0
    %1600 = vmatpush1.msra.mxu0 0.0
    %1601 = vmatprep.subr.mxu0 0.0
    %1602 = vmatpush1.msra.mxu0 0.0
    %1603 = vmatprep.subr.mxu0 0.0
    %1604 = vmatpush1.msra.mxu0 0.0
    %1605 = vmatprep.subr.mxu0 0.0
    %1606 = vmatpush1.msra.mxu0 0.0
    %1607 = vmatprep.subr.mxu0 0.0
    %1608 = vmatpush1.msra.mxu0 0.0
    %1609 = vmatprep.subr.mxu0 0.0
    %1610 = vmatpush1.msra.mxu0 0.0
    %1611 = vmatprep.subr.mxu0 0.0
    %1612 = vmatpush1.msra.mxu0 0.0
    %1613 = vmatprep.subr.mxu0 0.0
    %1614 = vmatpush1.msra.mxu0 0.0
    %1615 = vmatprep.subr.mxu0 0.0
    %1616 = vmatpush1.msra.mxu0 0.0
    %1617 = vmatprep.subr.mxu0 0.0
    %1618 = vmatpush1.msra.mxu0 0.0
    %1619 = vmatprep.subr.mxu0 0.0
    %1620 = vmatpush1.msra.mxu0 0.0
    %1621 = vmatprep.mubr.f32.mxu0 0.0
    %v1622 = vand.u32 %v85, 4294901760
    %1623 = vmatmul.mubr.f32.gmra.mrb[0].mxu0 %v1622
    %v1624 = vpop.f32.mrb[0].mxu0
    %v1625 = vadd.f32 %v1511, %v1624
    %v1626 = vpop.f32.mrb[0].mxu0
    %1627 = vmatprep.mubr.f32.mxu0 0.0
    %v1628 = vand.u32 %v88, 4294901760
    %1629 = vmatmul.mubr.f32.gmra.mrb[0].mxu0 %v1628
    %v1630 = vpop.f32.mrb[0].mxu0
    %v1631 = vadd.f32 %v1517, %v1630
    %v1632 = vpop.f32.mrb[0].mxu0
    %1633 = vmatprep.mubr.f32.mxu0 0.0
    %v1634 = vand.u32 %v91, 4294901760
    %1635 = vmatmul.mubr.f32.gmra.mrb[0].mxu0 %v1634
    %v1636 = vpop.f32.mrb[0].mxu0
    %v1637 = vadd.f32 %v1523, %v1636
    %v1638 = vpop.f32.mrb[0].mxu0
    %1639 = vmatprep.mubr.f32.mxu0 0.0
    %v1640 = vand.u32 %v94, 4294901760
    %1641 = vmatmul.mubr.f32.gmra.mrb[0].mxu0 %v1640
    %v1642 = vpop.f32.mrb[0].mxu0
    %v1643 = vadd.f32 %v1529, %v1642
    %v1644 = vpop.f32.mrb[0].mxu0
    %1645 = vmatprep.mubr.f32.mxu0 0.0
    %v1646 = vand.u32 %v97, 4294901760
    %1647 = vmatmul.mubr.f32.gmra.mrb[0].mxu0 %v1646
    %v1648 = vpop.f32.mrb[0].mxu0
    %v1649 = vadd.f32 %v1535, %v1648
    %v1650 = vpop.f32.mrb[0].mxu0
    %1651 = vmatprep.mubr.f32.mxu0 0.0
    %v1652 = vand.u32 %v100, 4294901760
    %1653 = vmatmul.mubr.f32.gmra.mrb[0].mxu0 %v1652
    %v1654 = vpop.f32.mrb[0].mxu0
    %v1655 = vadd.f32 %v1541, %v1654
    %v1656 = vpop.f32.mrb[0].mxu0
    %1657 = vmatprep.mubr.f32.mxu0 0.0
    %v1658 = vand.u32 %v103, 4294901760
    %1659 = vmatmul.mubr.f32.gmra.mrb[0].mxu0 %v1658
    %v1660 = vpop.f32.mrb[0].mxu0
    %v1661 = vadd.f32 %v1547, %v1660
    %v1662 = vpop.f32.mrb[0].mxu0
    %1663 = vmatprep.mubr.f32.mxu0 0.0
    %v1664 = vand.u32 %v106, 4294901760
    %1665 = vmatmul.mubr.f32.gmra.mrb[0].mxu0 %v1664
    %v1666 = vpop.f32.mrb[0].mxu0
    %v1667 = vadd.f32 %v1553, %v1666
    %v1668 = vpop.f32.mrb[0].mxu0
    %1669 = vdwg.mxu0
    %v1670 = vmax.f32 %v870, 0.0
    %v1671 = vmax.f32 %v872, 0.0
    %v1672 = vmax.f32 %v1625, 0.0
    %v1673 = vmax.f32 %v877, 0.0
    %v1674 = vmax.f32 %v879, 0.0
    %v1675 = vmax.f32 %v1631, 0.0
    %v1676 = vmax.f32 %v884, 0.0
    %v1677 = vmax.f32 %v886, 0.0
    %v1678 = vmax.f32 %v1637, 0.0
    %v1679 = vmax.f32 %v891, 0.0
    %v1680 = vmax.f32 %v893, 0.0
    %v1681 = vmax.f32 %v1643, 0.0
    %v1682 = vmax.f32 %v898, 0.0
    %v1683 = vmax.f32 %v900, 0.0
    %v1684 = vmax.f32 %v1649, 0.0
    %v1685 = vmax.f32 %v905, 0.0
    %v1686 = vmax.f32 %v907, 0.0
    %v1687 = vmax.f32 %v1655, 0.0
    %v1688 = vmax.f32 %v912, 0.0
    %v1689 = vmax.f32 %v914, 0.0
    %v1690 = vmax.f32 %v1661, 0.0
    %v1691 = vmax.f32 %v919, 0.0
    %v1692 = vmax.f32 %v921, 0.0
    %v1693 = vmax.f32 %v1667, 0.0
    %v1694 = vld [vmem:[%s3] sm:$0x1]
    %s1695 = sld [smem:[#allocation2]]
    %v1696 = vstv %s1695
    %vm1697 = vcmask 523264
    %v1699 = vsel %vm1697, %v1694, 0
    %v1701 = vand.u32 %v1671, 4294901760
    %1702 = vmatprep.subr.mxu0 %v1701
    %v1703 = vand.u32 %v1670, 4294901760
    %1704 = vmatpush1.msra.mxu0 %v1703
    %v1705 = vand.u32 %v1674, 4294901760
    %1706 = vmatprep.subr.mxu0 %v1705
    %v1707 = vand.u32 %v1673, 4294901760
    %1708 = vmatpush1.msra.mxu0 %v1707
    %v1709 = vand.u32 %v1677, 4294901760
    %1710 = vmatprep.subr.mxu0 %v1709
    %v1711 = vand.u32 %v1676, 4294901760
    %1712 = vmatpush1.msra.mxu0 %v1711
    %v1713 = vand.u32 %v1680, 4294901760
    %1714 = vmatprep.subr.mxu0 %v1713
    %v1715 = vand.u32 %v1679, 4294901760
    %1716 = vmatpush1.msra.mxu0 %v1715
    %v1717 = vand.u32 %v1683, 4294901760
    %1718 = vmatprep.subr.mxu0 %v1717
    %v1719 = vand.u32 %v1682, 4294901760
    %1720 = vmatpush1.msra.mxu0 %v1719
    %v1721 = vand.u32 %v1686, 4294901760
    %1722 = vmatprep.subr.mxu0 %v1721
    %v1723 = vand.u32 %v1685, 4294901760
    %1724 = vmatpush1.msra.mxu0 %v1723
    %v1725 = vand.u32 %v1689, 4294901760
    %1726 = vmatprep.subr.mxu0 %v1725
    %v1727 = vand.u32 %v1688, 4294901760
    %1728 = vmatpush1.msra.mxu0 %v1727
    %v1729 = vand.u32 %v1692, 4294901760
    %1730 = vmatprep.subr.mxu0 %v1729
    %v1731 = vand.u32 %v1691, 4294901760
    %1732 = vmatpush1.msra.mxu0 %v1731
    %1733 = vmatprep.subr.mxu0 0.0
    %1734 = vmatpush1.msra.mxu0 0.0
    %1735 = vmatprep.subr.mxu0 0.0
    %1736 = vmatpush1.msra.mxu0 0.0
    %1737 = vmatprep.subr.mxu0 0.0
    %1738 = vmatpush1.msra.mxu0 0.0
    %1739 = vmatprep.subr.mxu0 0.0
    %1740 = vmatpush1.msra.mxu0 0.0
    %1741 = vmatprep.subr.mxu0 0.0
    %1742 = vmatpush1.msra.mxu0 0.0
    %1743 = vmatprep.subr.mxu0 0.0
    %1744 = vmatpush1.msra.mxu0 0.0
    %1745 = vmatprep.subr.mxu0 0.0
    %1746 = vmatpush1.msra.mxu0 0.0
    %1747 = vmatprep.subr.mxu0 0.0
    %1748 = vmatpush1.msra.mxu0 0.0
    %1749 = vmatprep.subr.mxu0 0.0
    %1750 = vmatpush1.msra.mxu0 0.0
    %1751 = vmatprep.subr.mxu0 0.0
    %1752 = vmatpush1.msra.mxu0 0.0
    %1753 = vmatprep.subr.mxu0 0.0
    %1754 = vmatpush1.msra.mxu0 0.0
    %1755 = vmatprep.subr.mxu0 0.0
    %1756 = vmatpush1.msra.mxu0 0.0
    %1757 = vmatprep.subr.mxu0 0.0
    %1758 = vmatpush1.msra.mxu0 0.0
    %1759 = vmatprep.subr.mxu0 0.0
    %1760 = vmatpush1.msra.mxu0 0.0
    %1761 = vmatprep.subr.mxu0 0.0
    %1762 = vmatpush1.msra.mxu0 0.0
    %1763 = vmatprep.subr.mxu0 0.0
    %1764 = vmatpush1.msra.mxu0 0.0
    %1765 = vmatprep.subr.mxu0 0.0
    %1766 = vmatpush1.msra.mxu0 0.0
    %1767 = vmatprep.subr.mxu0 0.0
    %1768 = vmatpush1.msra.mxu0 0.0
    %1769 = vmatprep.subr.mxu0 0.0
    %1770 = vmatpush1.msra.mxu0 0.0
    %1771 = vmatprep.subr.mxu0 0.0
    %1772 = vmatpush1.msra.mxu0 0.0
    %1773 = vmatprep.subr.mxu0 0.0
    %1774 = vmatpush1.msra.mxu0 0.0
    %1775 = vmatprep.subr.mxu0 0.0
    %1776 = vmatpush1.msra.mxu0 0.0
    %1777 = vmatprep.subr.mxu0 0.0
    %1778 = vmatpush1.msra.mxu0 0.0
    %1779 = vmatprep.subr.mxu0 0.0
    %1780 = vmatpush1.msra.mxu0 0.0
    %1781 = vmatprep.mubr.f32.mxu0 0.0
    %v1782 = vand.u32 %v1699, 4294901760
    %v1783 = vsub.f32 %v1699, %v1782
    %v1784 = vand.u32 %v1783, 4294901760
    %v1785 = vsub.f32 %v1783, %v1784
    %v1786 = vand.u32 %v1785, 4294901760
    %1787 = vmatmul.mubr.f32.gmra.mrb[0].mxu0 %v1786
    %v1788 = vpop.f32.mrb[0].mxu0
    %v1789 = vadd.f32 %v1696, %v1788
    %v1790 = vpop.f32.mrb[0].mxu0
    %v1791 = vadd.f32 %v1696, %v1790
    %1792 = vdwg.mxu0
    %v1793 = vand.u32 %v1671, 4294901760
    %v1794 = vsub.f32 %v1671, %v1793
    %v1795 = vand.u32 %v1794, 4294901760
    %v1796 = vsub.f32 %v1794, %v1795
    %v1797 = vand.u32 %v1796, 4294901760
    %1798 = vmatprep.subr.mxu0 %v1797
    %v1799 = vand.u32 %v1670, 4294901760
    %v1800 = vsub.f32 %v1670, %v1799
    %v1801 = vand.u32 %v1800, 4294901760
    %v1802 = vsub.f32 %v1800, %v1801
    %v1803 = vand.u32 %v1802, 4294901760
    %1804 = vmatpush1.msra.mxu0 %v1803
    %v1805 = vand.u32 %v1674, 4294901760
    %v1806 = vsub.f32 %v1674, %v1805
    %v1807 = vand.u32 %v1806, 4294901760
    %v1808 = vsub.f32 %v1806, %v1807
    %v1809 = vand.u32 %v1808, 4294901760
    %1810 = vmatprep.subr.mxu0 %v1809
    %v1811 = vand.u32 %v1673, 4294901760
    %v1812 = vsub.f32 %v1673, %v1811
    %v1813 = vand.u32 %v1812, 4294901760
    %v1814 = vsub.f32 %v1812, %v1813
    %v1815 = vand.u32 %v1814, 4294901760
    %1816 = vmatpush1.msra.mxu0 %v1815
    %v1817 = vand.u32 %v1677, 4294901760
    %v1818 = vsub.f32 %v1677, %v1817
    %v1819 = vand.u32 %v1818, 4294901760
    %v1820 = vsub.f32 %v1818, %v1819
    %v1821 = vand.u32 %v1820, 4294901760
    %1822 = vmatprep.subr.mxu0 %v1821
    %v1823 = vand.u32 %v1676, 4294901760
    %v1824 = vsub.f32 %v1676, %v1823
    %v1825 = vand.u32 %v1824, 4294901760
    %v1826 = vsub.f32 %v1824, %v1825
    %v1827 = vand.u32 %v1826, 4294901760
    %1828 = vmatpush1.msra.mxu0 %v1827
    %v1829 = vand.u32 %v1680, 4294901760
    %v1830 = vsub.f32 %v1680, %v1829
    %v1831 = vand.u32 %v1830, 4294901760
    %v1832 = vsub.f32 %v1830, %v1831
    %v1833 = vand.u32 %v1832, 4294901760
    %1834 = vmatprep.subr.mxu0 %v1833
    %v1835 = vand.u32 %v1679, 4294901760
    %v1836 = vsub.f32 %v1679, %v1835
    %v1837 = vand.u32 %v1836, 4294901760
    %v1838 = vsub.f32 %v1836, %v1837
    %v1839 = vand.u32 %v1838, 4294901760
    %1840 = vmatpush1.msra.mxu0 %v1839
    %v1841 = vand.u32 %v1683, 4294901760
    %v1842 = vsub.f32 %v1683, %v1841
    %v1843 = vand.u32 %v1842, 4294901760
    %v1844 = vsub.f32 %v1842, %v1843
    %v1845 = vand.u32 %v1844, 4294901760
    %1846 = vmatprep.subr.mxu0 %v1845
    %v1847 = vand.u32 %v1682, 4294901760
    %v1848 = vsub.f32 %v1682, %v1847
    %v1849 = vand.u32 %v1848, 4294901760
    %v1850 = vsub.f32 %v1848, %v1849
    %v1851 = vand.u32 %v1850, 4294901760
    %1852 = vmatpush1.msra.mxu0 %v1851
    %v1853 = vand.u32 %v1686, 4294901760
    %v1854 = vsub.f32 %v1686, %v1853
    %v1855 = vand.u32 %v1854, 4294901760
    %v1856 = vsub.f32 %v1854, %v1855
    %v1857 = vand.u32 %v1856, 4294901760
    %1858 = vmatprep.subr.mxu0 %v1857
    %v1859 = vand.u32 %v1685, 4294901760
    %v1860 = vsub.f32 %v1685, %v1859
    %v1861 = vand.u32 %v1860, 4294901760
    %v1862 = vsub.f32 %v1860, %v1861
    %v1863 = vand.u32 %v1862, 4294901760
    %1864 = vmatpush1.msra.mxu0 %v1863
    %v1865 = vand.u32 %v1689, 4294901760
    %v1866 = vsub.f32 %v1689, %v1865
    %v1867 = vand.u32 %v1866, 4294901760
    %v1868 = vsub.f32 %v1866, %v1867
    %v1869 = vand.u32 %v1868, 4294901760
    %1870 = vmatprep.subr.mxu0 %v1869
    %v1871 = vand.u32 %v1688, 4294901760
    %v1872 = vsub.f32 %v1688, %v1871
    %v1873 = vand.u32 %v1872, 4294901760
    %v1874 = vsub.f32 %v1872, %v1873
    %v1875 = vand.u32 %v1874, 4294901760
    %1876 = vmatpush1.msra.mxu0 %v1875
    %v1877 = vand.u32 %v1692, 4294901760
    %v1878 = vsub.f32 %v1692, %v1877
    %v1879 = vand.u32 %v1878, 4294901760
    %v1880 = vsub.f32 %v1878, %v1879
    %v1881 = vand.u32 %v1880, 4294901760
    %1882 = vmatprep.subr.mxu0 %v1881
    %v1883 = vand.u32 %v1691, 4294901760
    %v1884 = vsub.f32 %v1691, %v1883
    %v1885 = vand.u32 %v1884, 4294901760
    %v1886 = vsub.f32 %v1884, %v1885
    %v1887 = vand.u32 %v1886, 4294901760
    %1888 = vmatpush1.msra.mxu0 %v1887
    %1889 = vmatprep.subr.mxu0 0.0
    %1890 = vmatpush1.msra.mxu0 0.0
    %1891 = vmatprep.subr.mxu0 0.0
    %1892 = vmatpush1.msra.mxu0 0.0
    %1893 = vmatprep.subr.mxu0 0.0
    %1894 = vmatpush1.msra.mxu0 0.0
    %1895 = vmatprep.subr.mxu0 0.0
    %1896 = vmatpush1.msra.mxu0 0.0
    %1897 = vmatprep.subr.mxu0 0.0
    %1898 = vmatpush1.msra.mxu0 0.0
    %1899 = vmatprep.subr.mxu0 0.0
    %1900 = vmatpush1.msra.mxu0 0.0
    %1901 = vmatprep.subr.mxu0 0.0
    %1902 = vmatpush1.msra.mxu0 0.0
    %1903 = vmatprep.subr.mxu0 0.0
    %1904 = vmatpush1.msra.mxu0 0.0
    %1905 = vmatprep.subr.mxu0 0.0
    %1906 = vmatpush1.msra.mxu0 0.0
    %1907 = vmatprep.subr.mxu0 0.0
    %1908 = vmatpush1.msra.mxu0 0.0
    %1909 = vmatprep.subr.mxu0 0.0
    %1910 = vmatpush1.msra.mxu0 0.0
    %1911 = vmatprep.subr.mxu0 0.0
    %1912 = vmatpush1.msra.mxu0 0.0
    %1913 = vmatprep.subr.mxu0 0.0
    %1914 = vmatpush1.msra.mxu0 0.0
    %1915 = vmatprep.subr.mxu0 0.0
    %1916 = vmatpush1.msra.mxu0 0.0
    %1917 = vmatprep.subr.mxu0 0.0
    %1918 = vmatpush1.msra.mxu0 0.0
    %1919 = vmatprep.subr.mxu0 0.0
    %1920 = vmatpush1.msra.mxu0 0.0
    %1921 = vmatprep.subr.mxu0 0.0
    %1922 = vmatpush1.msra.mxu0 0.0
    %1923 = vmatprep.subr.mxu0 0.0
    %1924 = vmatpush1.msra.mxu0 0.0
    %1925 = vmatprep.subr.mxu0 0.0
    %1926 = vmatpush1.msra.mxu0 0.0
    %1927 = vmatprep.subr.mxu0 0.0
    %1928 = vmatpush1.msra.mxu0 0.0
    %1929 = vmatprep.subr.mxu0 0.0
    %1930 = vmatpush1.msra.mxu0 0.0
    %1931 = vmatprep.subr.mxu0 0.0
    %1932 = vmatpush1.msra.mxu0 0.0
    %1933 = vmatprep.subr.mxu0 0.0
    %1934 = vmatpush1.msra.mxu0 0.0
    %1935 = vmatprep.subr.mxu0 0.0
    %1936 = vmatpush1.msra.mxu0 0.0
    %1937 = vmatprep.mubr.f32.mxu0 0.0
    %v1938 = vand.u32 %v1699, 4294901760
    %1939 = vmatmul.mubr.f32.gmra.mrb[0].mxu0 %v1938
    %v1940 = vpop.f32.mrb[0].mxu0
    %v1941 = vadd.f32 %v1789, %v1940
    %v1942 = vpop.f32.mrb[0].mxu0
    %v1943 = vadd.f32 %v1791, %v1942
    %1944 = vdwg.mxu0
    %v1945 = vand.u32 %v1671, 4294901760
    %v1946 = vsub.f32 %v1671, %v1945
    %1947 = vmatprep.subr.mxu0 %v1946
    %v1948 = vand.u32 %v1670, 4294901760
    %v1949 = vsub.f32 %v1670, %v1948
    %1950 = vmatpush1.msra.mxu0 %v1949
    %v1951 = vand.u32 %v1674, 4294901760
    %v1952 = vsub.f32 %v1674, %v1951
    %1953 = vmatprep.subr.mxu0 %v1952
    %v1954 = vand.u32 %v1673, 4294901760
    %v1955 = vsub.f32 %v1673, %v1954
    %1956 = vmatpush1.msra.mxu0 %v1955
    %v1957 = vand.u32 %v1677, 4294901760
    %v1958 = vsub.f32 %v1677, %v1957
    %1959 = vmatprep.subr.mxu0 %v1958
    %v1960 = vand.u32 %v1676, 4294901760
    %v1961 = vsub.f32 %v1676, %v1960
    %1962 = vmatpush1.msra.mxu0 %v1961
    %v1963 = vand.u32 %v1680, 4294901760
    %v1964 = vsub.f32 %v1680, %v1963
    %1965 = vmatprep.subr.mxu0 %v1964
    %v1966 = vand.u32 %v1679, 4294901760
    %v1967 = vsub.f32 %v1679, %v1966
    %1968 = vmatpush1.msra.mxu0 %v1967
    %v1969 = vand.u32 %v1683, 4294901760
    %v1970 = vsub.f32 %v1683, %v1969
    %1971 = vmatprep.subr.mxu0 %v1970
    %v1972 = vand.u32 %v1682, 4294901760
    %v1973 = vsub.f32 %v1682, %v1972
    %1974 = vmatpush1.msra.mxu0 %v1973
    %v1975 = vand.u32 %v1686, 4294901760
    %v1976 = vsub.f32 %v1686, %v1975
    %1977 = vmatprep.subr.mxu0 %v1976
    %v1978 = vand.u32 %v1685, 4294901760
    %v1979 = vsub.f32 %v1685, %v1978
    %1980 = vmatpush1.msra.mxu0 %v1979
    %v1981 = vand.u32 %v1689, 4294901760
    %v1982 = vsub.f32 %v1689, %v1981
    %1983 = vmatprep.subr.mxu0 %v1982
    %v1984 = vand.u32 %v1688, 4294901760
    %v1985 = vsub.f32 %v1688, %v1984
    %1986 = vmatpush1.msra.mxu0 %v1985
    %v1987 = vand.u32 %v1692, 4294901760
    %v1988 = vsub.f32 %v1692, %v1987
    %1989 = vmatprep.subr.mxu0 %v1988
    %v1990 = vand.u32 %v1691, 4294901760
    %v1991 = vsub.f32 %v1691, %v1990
    %1992 = vmatpush1.msra.mxu0 %v1991
    %1993 = vmatprep.subr.mxu0 0.0
    %1994 = vmatpush1.msra.mxu0 0.0
    %1995 = vmatprep.subr.mxu0 0.0
    %1996 = vmatpush1.msra.mxu0 0.0
    %1997 = vmatprep.subr.mxu0 0.0
    %1998 = vmatpush1.msra.mxu0 0.0
    %1999 = vmatprep.subr.mxu0 0.0
    %2000 = vmatpush1.msra.mxu0 0.0
    %2001 = vmatprep.subr.mxu0 0.0
    %2002 = vmatpush1.msra.mxu0 0.0
    %2003 = vmatprep.subr.mxu0 0.0
    %2004 = vmatpush1.msra.mxu0 0.0
    %2005 = vmatprep.subr.mxu0 0.0
    %2006 = vmatpush1.msra.mxu0 0.0
    %2007 = vmatprep.subr.mxu0 0.0
    %2008 = vmatpush1.msra.mxu0 0.0
    %2009 = vmatprep.subr.mxu0 0.0
    %2010 = vmatpush1.msra.mxu0 0.0
    %2011 = vmatprep.subr.mxu0 0.0
    %2012 = vmatpush1.msra.mxu0 0.0
    %2013 = vmatprep.subr.mxu0 0.0
    %2014 = vmatpush1.msra.mxu0 0.0
    %2015 = vmatprep.subr.mxu0 0.0
    %2016 = vmatpush1.msra.mxu0 0.0
    %2017 = vmatprep.subr.mxu0 0.0
    %2018 = vmatpush1.msra.mxu0 0.0
    %2019 = vmatprep.subr.mxu0 0.0
    %2020 = vmatpush1.msra.mxu0 0.0
    %2021 = vmatprep.subr.mxu0 0.0
    %2022 = vmatpush1.msra.mxu0 0.0
    %2023 = vmatprep.subr.mxu0 0.0
    %2024 = vmatpush1.msra.mxu0 0.0
    %2025 = vmatprep.subr.mxu0 0.0
    %2026 = vmatpush1.msra.mxu0 0.0
    %2027 = vmatprep.subr.mxu0 0.0
    %2028 = vmatpush1.msra.mxu0 0.0
    %2029 = vmatprep.subr.mxu0 0.0
    %2030 = vmatpush1.msra.mxu0 0.0
    %2031 = vmatprep.subr.mxu0 0.0
    %2032 = vmatpush1.msra.mxu0 0.0
    %2033 = vmatprep.subr.mxu0 0.0
    %2034 = vmatpush1.msra.mxu0 0.0
    %2035 = vmatprep.subr.mxu0 0.0
    %2036 = vmatpush1.msra.mxu0 0.0
    %2037 = vmatprep.subr.mxu0 0.0
    %2038 = vmatpush1.msra.mxu0 0.0
    %2039 = vmatprep.subr.mxu0 0.0
    %2040 = vmatpush1.msra.mxu0 0.0
    %2041 = vmatprep.mubr.f32.mxu0 0.0
    %v2042 = vand.u32 %v1699, 4294901760
    %v2043 = vsub.f32 %v1699, %v2042
    %2044 = vmatmul.mubr.f32.gmra.mrb[0].mxu0 %v2043
    %v2045 = vpop.f32.mrb[0].mxu0
    %v2046 = vadd.f32 %v1941, %v2045
    %v2047 = vpop.f32.mrb[0].mxu0
    %v2048 = vadd.f32 %v1943, %v2047
    %2049 = vdwg.mxu0
    %v2050 = vand.u32 %v1671, 4294901760
    %2051 = vmatprep.subr.mxu0 %v2050
    %v2052 = vand.u32 %v1670, 4294901760
    %2053 = vmatpush1.msra.mxu0 %v2052
    %v2054 = vand.u32 %v1674, 4294901760
    %2055 = vmatprep.subr.mxu0 %v2054
    %v2056 = vand.u32 %v1673, 4294901760
    %2057 = vmatpush1.msra.mxu0 %v2056
    %v2058 = vand.u32 %v1677, 4294901760
    %2059 = vmatprep.subr.mxu0 %v2058
    %v2060 = vand.u32 %v1676, 4294901760
    %2061 = vmatpush1.msra.mxu0 %v2060
    %v2062 = vand.u32 %v1680, 4294901760
    %2063 = vmatprep.subr.mxu0 %v2062
    %v2064 = vand.u32 %v1679, 4294901760
    %2065 = vmatpush1.msra.mxu0 %v2064
    %v2066 = vand.u32 %v1683, 4294901760
    %2067 = vmatprep.subr.mxu0 %v2066
    %v2068 = vand.u32 %v1682, 4294901760
    %2069 = vmatpush1.msra.mxu0 %v2068
    %v2070 = vand.u32 %v1686, 4294901760
    %2071 = vmatprep.subr.mxu0 %v2070
    %v2072 = vand.u32 %v1685, 4294901760
    %2073 = vmatpush1.msra.mxu0 %v2072
    %v2074 = vand.u32 %v1689, 4294901760
    %2075 = vmatprep.subr.mxu0 %v2074
    %v2076 = vand.u32 %v1688, 4294901760
    %2077 = vmatpush1.msra.mxu0 %v2076
    %v2078 = vand.u32 %v1692, 4294901760
    %2079 = vmatprep.subr.mxu0 %v2078
    %v2080 = vand.u32 %v1691, 4294901760
    %2081 = vmatpush1.msra.mxu0 %v2080
    %2082 = vmatprep.subr.mxu0 0.0
    %2083 = vmatpush1.msra.mxu0 0.0
    %2084 = vmatprep.subr.mxu0 0.0
    %2085 = vmatpush1.msra.mxu0 0.0
    %2086 = vmatprep.subr.mxu0 0.0
    %2087 = vmatpush1.msra.mxu0 0.0
    %2088 = vmatprep.subr.mxu0 0.0
    %2089 = vmatpush1.msra.mxu0 0.0
    %2090 = vmatprep.subr.mxu0 0.0
    %2091 = vmatpush1.msra.mxu0 0.0
    %2092 = vmatprep.subr.mxu0 0.0
    %2093 = vmatpush1.msra.mxu0 0.0
    %2094 = vmatprep.subr.mxu0 0.0
    %2095 = vmatpush1.msra.mxu0 0.0
    %2096 = vmatprep.subr.mxu0 0.0
    %2097 = vmatpush1.msra.mxu0 0.0
    %2098 = vmatprep.subr.mxu0 0.0
    %2099 = vmatpush1.msra.mxu0 0.0
    %2100 = vmatprep.subr.mxu0 0.0
    %2101 = vmatpush1.msra.mxu0 0.0
    %2102 = vmatprep.subr.mxu0 0.0
    %2103 = vmatpush1.msra.mxu0 0.0
    %2104 = vmatprep.subr.mxu0 0.0
    %2105 = vmatpush1.msra.mxu0 0.0
    %2106 = vmatprep.subr.mxu0 0.0
    %2107 = vmatpush1.msra.mxu0 0.0
    %2108 = vmatprep.subr.mxu0 0.0
    %2109 = vmatpush1.msra.mxu0 0.0
    %2110 = vmatprep.subr.mxu0 0.0
    %2111 = vmatpush1.msra.mxu0 0.0
    %2112 = vmatprep.subr.mxu0 0.0
    %2113 = vmatpush1.msra.mxu0 0.0
    %2114 = vmatprep.subr.mxu0 0.0
    %2115 = vmatpush1.msra.mxu0 0.0
    %2116 = vmatprep.subr.mxu0 0.0
    %2117 = vmatpush1.msra.mxu0 0.0
    %2118 = vmatprep.subr.mxu0 0.0
    %2119 = vmatpush1.msra.mxu0 0.0
    %2120 = vmatprep.subr.mxu0 0.0
    %2121 = vmatpush1.msra.mxu0 0.0
    %2122 = vmatprep.subr.mxu0 0.0
    %2123 = vmatpush1.msra.mxu0 0.0
    %2124 = vmatprep.subr.mxu0 0.0
    %2125 = vmatpush1.msra.mxu0 0.0
    %2126 = vmatprep.subr.mxu0 0.0
    %2127 = vmatpush1.msra.mxu0 0.0
    %2128 = vmatprep.subr.mxu0 0.0
    %2129 = vmatpush1.msra.mxu0 0.0
    %2130 = vmatprep.mubr.f32.mxu0 0.0
    %v2131 = vand.u32 %v1699, 4294901760
    %v2132 = vsub.f32 %v1699, %v2131
    %v2133 = vand.u32 %v2132, 4294901760
    %2134 = vmatmul.mubr.f32.gmra.mrb[0].mxu0 %v2133
    %v2135 = vpop.f32.mrb[0].mxu0
    %v2136 = vadd.f32 %v2046, %v2135
    %v2137 = vpop.f32.mrb[0].mxu0
    %v2138 = vadd.f32 %v2048, %v2137
    %2139 = vdwg.mxu0
    %v2140 = vand.u32 %v1671, 4294901760
    %v2141 = vsub.f32 %v1671, %v2140
    %v2142 = vand.u32 %v2141, 4294901760
    %2143 = vmatprep.subr.mxu0 %v2142
    %v2144 = vand.u32 %v1670, 4294901760
    %v2145 = vsub.f32 %v1670, %v2144
    %v2146 = vand.u32 %v2145, 4294901760
    %2147 = vmatpush1.msra.mxu0 %v2146
    %v2148 = vand.u32 %v1674, 4294901760
    %v2149 = vsub.f32 %v1674, %v2148
    %v2150 = vand.u32 %v2149, 4294901760
    %2151 = vmatprep.subr.mxu0 %v2150
    %v2152 = vand.u32 %v1673, 4294901760
    %v2153 = vsub.f32 %v1673, %v2152
    %v2154 = vand.u32 %v2153, 4294901760
    %2155 = vmatpush1.msra.mxu0 %v2154
    %v2156 = vand.u32 %v1677, 4294901760
    %v2157 = vsub.f32 %v1677, %v2156
    %v2158 = vand.u32 %v2157, 4294901760
    %2159 = vmatprep.subr.mxu0 %v2158
    %v2160 = vand.u32 %v1676, 4294901760
    %v2161 = vsub.f32 %v1676, %v2160
    %v2162 = vand.u32 %v2161, 4294901760
    %2163 = vmatpush1.msra.mxu0 %v2162
    %v2164 = vand.u32 %v1680, 4294901760
    %v2165 = vsub.f32 %v1680, %v2164
    %v2166 = vand.u32 %v2165, 4294901760
    %2167 = vmatprep.subr.mxu0 %v2166
    %v2168 = vand.u32 %v1679, 4294901760
    %v2169 = vsub.f32 %v1679, %v2168
    %v2170 = vand.u32 %v2169, 4294901760
    %2171 = vmatpush1.msra.mxu0 %v2170
    %v2172 = vand.u32 %v1683, 4294901760
    %v2173 = vsub.f32 %v1683, %v2172
    %v2174 = vand.u32 %v2173, 4294901760
    %2175 = vmatprep.subr.mxu0 %v2174
    %v2176 = vand.u32 %v1682, 4294901760
    %v2177 = vsub.f32 %v1682, %v2176
    %v2178 = vand.u32 %v2177, 4294901760
    %2179 = vmatpush1.msra.mxu0 %v2178
    %v2180 = vand.u32 %v1686, 4294901760
    %v2181 = vsub.f32 %v1686, %v2180
    %v2182 = vand.u32 %v2181, 4294901760
    %2183 = vmatprep.subr.mxu0 %v2182
    %v2184 = vand.u32 %v1685, 4294901760
    %v2185 = vsub.f32 %v1685, %v2184
    %v2186 = vand.u32 %v2185, 4294901760
    %2187 = vmatpush1.msra.mxu0 %v2186
    %v2188 = vand.u32 %v1689, 4294901760
    %v2189 = vsub.f32 %v1689, %v2188
    %v2190 = vand.u32 %v2189, 4294901760
    %2191 = vmatprep.subr.mxu0 %v2190
    %v2192 = vand.u32 %v1688, 4294901760
    %v2193 = vsub.f32 %v1688, %v2192
    %v2194 = vand.u32 %v2193, 4294901760
    %2195 = vmatpush1.msra.mxu0 %v2194
    %v2196 = vand.u32 %v1692, 4294901760
    %v2197 = vsub.f32 %v1692, %v2196
    %v2198 = vand.u32 %v2197, 4294901760
    %2199 = vmatprep.subr.mxu0 %v2198
    %v2200 = vand.u32 %v1691, 4294901760
    %v2201 = vsub.f32 %v1691, %v2200
    %v2202 = vand.u32 %v2201, 4294901760
    %2203 = vmatpush1.msra.mxu0 %v2202
    %2204 = vmatprep.subr.mxu0 0.0
    %2205 = vmatpush1.msra.mxu0 0.0
    %2206 = vmatprep.subr.mxu0 0.0
    %2207 = vmatpush1.msra.mxu0 0.0
    %2208 = vmatprep.subr.mxu0 0.0
    %2209 = vmatpush1.msra.mxu0 0.0
    %2210 = vmatprep.subr.mxu0 0.0
    %2211 = vmatpush1.msra.mxu0 0.0
    %2212 = vmatprep.subr.mxu0 0.0
    %2213 = vmatpush1.msra.mxu0 0.0
    %2214 = vmatprep.subr.mxu0 0.0
    %2215 = vmatpush1.msra.mxu0 0.0
    %2216 = vmatprep.subr.mxu0 0.0
    %2217 = vmatpush1.msra.mxu0 0.0
    %2218 = vmatprep.subr.mxu0 0.0
    %2219 = vmatpush1.msra.mxu0 0.0
    %2220 = vmatprep.subr.mxu0 0.0
    %2221 = vmatpush1.msra.mxu0 0.0
    %2222 = vmatprep.subr.mxu0 0.0
    %2223 = vmatpush1.msra.mxu0 0.0
    %2224 = vmatprep.subr.mxu0 0.0
    %2225 = vmatpush1.msra.mxu0 0.0
    %2226 = vmatprep.subr.mxu0 0.0
    %2227 = vmatpush1.msra.mxu0 0.0
    %2228 = vmatprep.subr.mxu0 0.0
    %2229 = vmatpush1.msra.mxu0 0.0
    %2230 = vmatprep.subr.mxu0 0.0
    %2231 = vmatpush1.msra.mxu0 0.0
    %2232 = vmatprep.subr.mxu0 0.0
    %2233 = vmatpush1.msra.mxu0 0.0
    %2234 = vmatprep.subr.mxu0 0.0
    %2235 = vmatpush1.msra.mxu0 0.0
    %2236 = vmatprep.subr.mxu0 0.0
    %2237 = vmatpush1.msra.mxu0 0.0
    %2238 = vmatprep.subr.mxu0 0.0
    %2239 = vmatpush1.msra.mxu0 0.0
    %2240 = vmatprep.subr.mxu0 0.0
    %2241 = vmatpush1.msra.mxu0 0.0
    %2242 = vmatprep.subr.mxu0 0.0
    %2243 = vmatpush1.msra.mxu0 0.0
    %2244 = vmatprep.subr.mxu0 0.0
    %2245 = vmatpush1.msra.mxu0 0.0
    %2246 = vmatprep.subr.mxu0 0.0
    %2247 = vmatpush1.msra.mxu0 0.0
    %2248 = vmatprep.subr.mxu0 0.0
    %2249 = vmatpush1.msra.mxu0 0.0
    %2250 = vmatprep.subr.mxu0 0.0
    %2251 = vmatpush1.msra.mxu0 0.0
    %2252 = vmatprep.mubr.f32.mxu0 0.0
    %v2253 = vand.u32 %v1699, 4294901760
    %2254 = vmatmul.mubr.f32.gmra.mrb[0].mxu0 %v2253
    %v2255 = vpop.f32.mrb[0].mxu0
    %v2256 = vadd.f32 %v2136, %v2255
    %v2257 = vpop.f32.mrb[0].mxu0
    %v2258 = vadd.f32 %v2138, %v2257
    %2259 = vdwg.mxu0
    %v2260 = vand.u32 %v1671, 4294901760
    %2261 = vmatprep.subr.mxu0 %v2260
    %v2262 = vand.u32 %v1670, 4294901760
    %2263 = vmatpush1.msra.mxu0 %v2262
    %v2264 = vand.u32 %v1674, 4294901760
    %2265 = vmatprep.subr.mxu0 %v2264
    %v2266 = vand.u32 %v1673, 4294901760
    %2267 = vmatpush1.msra.mxu0 %v2266
    %v2268 = vand.u32 %v1677, 4294901760
    %2269 = vmatprep.subr.mxu0 %v2268
    %v2270 = vand.u32 %v1676, 4294901760
    %2271 = vmatpush1.msra.mxu0 %v2270
    %v2272 = vand.u32 %v1680, 4294901760
    %2273 = vmatprep.subr.mxu0 %v2272
    %v2274 = vand.u32 %v1679, 4294901760
    %2275 = vmatpush1.msra.mxu0 %v2274
    %v2276 = vand.u32 %v1683, 4294901760
    %2277 = vmatprep.subr.mxu0 %v2276
    %v2278 = vand.u32 %v1682, 4294901760
    %2279 = vmatpush1.msra.mxu0 %v2278
    %v2280 = vand.u32 %v1686, 4294901760
    %2281 = vmatprep.subr.mxu0 %v2280
    %v2282 = vand.u32 %v1685, 4294901760
    %2283 = vmatpush1.msra.mxu0 %v2282
    %v2284 = vand.u32 %v1689, 4294901760
    %2285 = vmatprep.subr.mxu0 %v2284
    %v2286 = vand.u32 %v1688, 4294901760
    %2287 = vmatpush1.msra.mxu0 %v2286
    %v2288 = vand.u32 %v1692, 4294901760
    %2289 = vmatprep.subr.mxu0 %v2288
    %v2290 = vand.u32 %v1691, 4294901760
    %2291 = vmatpush1.msra.mxu0 %v2290
    %2292 = vmatprep.subr.mxu0 0.0
    %2293 = vmatpush1.msra.mxu0 0.0
    %2294 = vmatprep.subr.mxu0 0.0
    %2295 = vmatpush1.msra.mxu0 0.0
    %2296 = vmatprep.subr.mxu0 0.0
    %2297 = vmatpush1.msra.mxu0 0.0
    %2298 = vmatprep.subr.mxu0 0.0
    %2299 = vmatpush1.msra.mxu0 0.0
    %2300 = vmatprep.subr.mxu0 0.0
    %2301 = vmatpush1.msra.mxu0 0.0
    %2302 = vmatprep.subr.mxu0 0.0
    %2303 = vmatpush1.msra.mxu0 0.0
    %2304 = vmatprep.subr.mxu0 0.0
    %2305 = vmatpush1.msra.mxu0 0.0
    %2306 = vmatprep.subr.mxu0 0.0
    %2307 = vmatpush1.msra.mxu0 0.0
    %2308 = vmatprep.subr.mxu0 0.0
    %2309 = vmatpush1.msra.mxu0 0.0
    %2310 = vmatprep.subr.mxu0 0.0
    %2311 = vmatpush1.msra.mxu0 0.0
    %2312 = vmatprep.subr.mxu0 0.0
    %2313 = vmatpush1.msra.mxu0 0.0
    %2314 = vmatprep.subr.mxu0 0.0
    %2315 = vmatpush1.msra.mxu0 0.0
    %2316 = vmatprep.subr.mxu0 0.0
    %2317 = vmatpush1.msra.mxu0 0.0
    %2318 = vmatprep.subr.mxu0 0.0
    %2319 = vmatpush1.msra.mxu0 0.0
    %2320 = vmatprep.subr.mxu0 0.0
    %2321 = vmatpush1.msra.mxu0 0.0
    %2322 = vmatprep.subr.mxu0 0.0
    %2323 = vmatpush1.msra.mxu0 0.0
    %2324 = vmatprep.subr.mxu0 0.0
    %2325 = vmatpush1.msra.mxu0 0.0
    %2326 = vmatprep.subr.mxu0 0.0
    %2327 = vmatpush1.msra.mxu0 0.0
    %2328 = vmatprep.subr.mxu0 0.0
    %2329 = vmatpush1.msra.mxu0 0.0
    %2330 = vmatprep.subr.mxu0 0.0
    %2331 = vmatpush1.msra.mxu0 0.0
    %2332 = vmatprep.subr.mxu0 0.0
    %2333 = vmatpush1.msra.mxu0 0.0
    %2334 = vmatprep.subr.mxu0 0.0
    %2335 = vmatpush1.msra.mxu0 0.0
    %2336 = vmatprep.subr.mxu0 0.0
    %2337 = vmatpush1.msra.mxu0 0.0
    %2338 = vmatprep.subr.mxu0 0.0
    %2339 = vmatpush1.msra.mxu0 0.0
    %2340 = vmatprep.mubr.f32.mxu0 0.0
    %v2341 = vand.u32 %v1699, 4294901760
    %2342 = vmatmul.mubr.f32.gmra.mrb[0].mxu0 %v2341
    %v2343 = vpop.f32.mrb[0].mxu0
    %v2344 = vadd.f32 %v2256, %v2343
    %v2345 = vpop.f32.mrb[0].mxu0
    %v2346 = vadd.f32 %v2258, %v2345
    %2347 = vdwg.mxu0
    %2348 = vmatprep.subr.mxu0 0.0
    %v2349 = vand.u32 %v1672, 4294901760
    %2350 = vmatpush1.msra.mxu0 %v2349
    %2351 = vmatprep.subr.mxu0 0.0
    %v2352 = vand.u32 %v1675, 4294901760
    %2353 = vmatpush1.msra.mxu0 %v2352
    %2354 = vmatprep.subr.mxu0 0.0
    %v2355 = vand.u32 %v1678, 4294901760
    %2356 = vmatpush1.msra.mxu0 %v2355
    %2357 = vmatprep.subr.mxu0 0.0
    %v2358 = vand.u32 %v1681, 4294901760
    %2359 = vmatpush1.msra.mxu0 %v2358
    %2360 = vmatprep.subr.mxu0 0.0
    %v2361 = vand.u32 %v1684, 4294901760
    %2362 = vmatpush1.msra.mxu0 %v2361
    %2363 = vmatprep.subr.mxu0 0.0
    %v2364 = vand.u32 %v1687, 4294901760
    %2365 = vmatpush1.msra.mxu0 %v2364
    %2366 = vmatprep.subr.mxu0 0.0
    %v2367 = vand.u32 %v1690, 4294901760
    %2368 = vmatpush1.msra.mxu0 %v2367
    %2369 = vmatprep.subr.mxu0 0.0
    %v2370 = vand.u32 %v1693, 4294901760
    %2371 = vmatpush1.msra.mxu0 %v2370
    %2372 = vmatprep.subr.mxu0 0.0
    %2373 = vmatpush1.msra.mxu0 0.0
    %2374 = vmatprep.subr.mxu0 0.0
    %2375 = vmatpush1.msra.mxu0 0.0
    %2376 = vmatprep.subr.mxu0 0.0
    %2377 = vmatpush1.msra.mxu0 0.0
    %2378 = vmatprep.subr.mxu0 0.0
    %2379 = vmatpush1.msra.mxu0 0.0
    %2380 = vmatprep.subr.mxu0 0.0
    %2381 = vmatpush1.msra.mxu0 0.0
    %2382 = vmatprep.subr.mxu0 0.0
    %2383 = vmatpush1.msra.mxu0 0.0
    %2384 = vmatprep.subr.mxu0 0.0
    %2385 = vmatpush1.msra.mxu0 0.0
    %2386 = vmatprep.subr.mxu0 0.0
    %2387 = vmatpush1.msra.mxu0 0.0
    %2388 = vmatprep.subr.mxu0 0.0
    %2389 = vmatpush1.msra.mxu0 0.0
    %2390 = vmatprep.subr.mxu0 0.0
    %2391 = vmatpush1.msra.mxu0 0.0
    %2392 = vmatprep.subr.mxu0 0.0
    %2393 = vmatpush1.msra.mxu0 0.0
    %2394 = vmatprep.subr.mxu0 0.0
    %2395 = vmatpush1.msra.mxu0 0.0
    %2396 = vmatprep.subr.mxu0 0.0
    %2397 = vmatpush1.msra.mxu0 0.0
    %2398 = vmatprep.subr.mxu0 0.0
    %2399 = vmatpush1.msra.mxu0 0.0
    %2400 = vmatprep.subr.mxu0 0.0
    %2401 = vmatpush1.msra.mxu0 0.0
    %2402 = vmatprep.subr.mxu0 0.0
    %2403 = vmatpush1.msra.mxu0 0.0
    %2404 = vmatprep.subr.mxu0 0.0
    %2405 = vmatpush1.msra.mxu0 0.0
    %2406 = vmatprep.subr.mxu0 0.0
    %2407 = vmatpush1.msra.mxu0 0.0
    %2408 = vmatprep.subr.mxu0 0.0
    %2409 = vmatpush1.msra.mxu0 0.0
    %2410 = vmatprep.subr.mxu0 0.0
    %2411 = vmatpush1.msra.mxu0 0.0
    %2412 = vmatprep.subr.mxu0 0.0
    %2413 = vmatpush1.msra.mxu0 0.0
    %2414 = vmatprep.subr.mxu0 0.0
    %2415 = vmatpush1.msra.mxu0 0.0
    %2416 = vmatprep.subr.mxu0 0.0
    %2417 = vmatpush1.msra.mxu0 0.0
    %2418 = vmatprep.subr.mxu0 0.0
    %2419 = vmatpush1.msra.mxu0 0.0
    %2420 = vmatprep.mubr.f32.mxu0 0.0
    %v2421 = vand.u32 %v1699, 4294901760
    %v2422 = vsub.f32 %v1699, %v2421
    %v2423 = vand.u32 %v2422, 4294901760
    %v2424 = vsub.f32 %v2422, %v2423
    %v2425 = vand.u32 %v2424, 4294901760
    %2426 = vmatmul.mubr.f32.gmra.mrb[0].mxu0 %v2425
    %v2427 = vpop.f32.mrb[0].mxu0
    %v2428 = vadd.f32 %v1696, %v2427
    %v2429 = vpop.f32.mrb[0].mxu0
    %2430 = vdwg.mxu0
    %2431 = vmatprep.subr.mxu0 0.0
    %v2432 = vand.u32 %v1672, 4294901760
    %v2433 = vsub.f32 %v1672, %v2432
    %v2434 = vand.u32 %v2433, 4294901760
    %v2435 = vsub.f32 %v2433, %v2434
    %v2436 = vand.u32 %v2435, 4294901760
    %2437 = vmatpush1.msra.mxu0 %v2436
    %2438 = vmatprep.subr.mxu0 0.0
    %v2439 = vand.u32 %v1675, 4294901760
    %v2440 = vsub.f32 %v1675, %v2439
    %v2441 = vand.u32 %v2440, 4294901760
    %v2442 = vsub.f32 %v2440, %v2441
    %v2443 = vand.u32 %v2442, 4294901760
    %2444 = vmatpush1.msra.mxu0 %v2443
    %2445 = vmatprep.subr.mxu0 0.0
    %v2446 = vand.u32 %v1678, 4294901760
    %v2447 = vsub.f32 %v1678, %v2446
    %v2448 = vand.u32 %v2447, 4294901760
    %v2449 = vsub.f32 %v2447, %v2448
    %v2450 = vand.u32 %v2449, 4294901760
    %2451 = vmatpush1.msra.mxu0 %v2450
    %2452 = vmatprep.subr.mxu0 0.0
    %v2453 = vand.u32 %v1681, 4294901760
    %v2454 = vsub.f32 %v1681, %v2453
    %v2455 = vand.u32 %v2454, 4294901760
    %v2456 = vsub.f32 %v2454, %v2455
    %v2457 = vand.u32 %v2456, 4294901760
    %2458 = vmatpush1.msra.mxu0 %v2457
    %2459 = vmatprep.subr.mxu0 0.0
    %v2460 = vand.u32 %v1684, 4294901760
    %v2461 = vsub.f32 %v1684, %v2460
    %v2462 = vand.u32 %v2461, 4294901760
    %v2463 = vsub.f32 %v2461, %v2462
    %v2464 = vand.u32 %v2463, 4294901760
    %2465 = vmatpush1.msra.mxu0 %v2464
    %2466 = vmatprep.subr.mxu0 0.0
    %v2467 = vand.u32 %v1687, 4294901760
    %v2468 = vsub.f32 %v1687, %v2467
    %v2469 = vand.u32 %v2468, 4294901760
    %v2470 = vsub.f32 %v2468, %v2469
    %v2471 = vand.u32 %v2470, 4294901760
    %2472 = vmatpush1.msra.mxu0 %v2471
    %2473 = vmatprep.subr.mxu0 0.0
    %v2474 = vand.u32 %v1690, 4294901760
    %v2475 = vsub.f32 %v1690, %v2474
    %v2476 = vand.u32 %v2475, 4294901760
    %v2477 = vsub.f32 %v2475, %v2476
    %v2478 = vand.u32 %v2477, 4294901760
    %2479 = vmatpush1.msra.mxu0 %v2478
    %2480 = vmatprep.subr.mxu0 0.0
    %v2481 = vand.u32 %v1693, 4294901760
    %v2482 = vsub.f32 %v1693, %v2481
    %v2483 = vand.u32 %v2482, 4294901760
    %v2484 = vsub.f32 %v2482, %v2483
    %v2485 = vand.u32 %v2484, 4294901760
    %2486 = vmatpush1.msra.mxu0 %v2485
    %2487 = vmatprep.subr.mxu0 0.0
    %2488 = vmatpush1.msra.mxu0 0.0
    %2489 = vmatprep.subr.mxu0 0.0
    %2490 = vmatpush1.msra.mxu0 0.0
    %2491 = vmatprep.subr.mxu0 0.0
    %2492 = vmatpush1.msra.mxu0 0.0
    %2493 = vmatprep.subr.mxu0 0.0
    %2494 = vmatpush1.msra.mxu0 0.0
    %2495 = vmatprep.subr.mxu0 0.0
    %2496 = vmatpush1.msra.mxu0 0.0
    %2497 = vmatprep.subr.mxu0 0.0
    %2498 = vmatpush1.msra.mxu0 0.0
    %2499 = vmatprep.subr.mxu0 0.0
    %2500 = vmatpush1.msra.mxu0 0.0
    %2501 = vmatprep.subr.mxu0 0.0
    %2502 = vmatpush1.msra.mxu0 0.0
    %2503 = vmatprep.subr.mxu0 0.0
    %2504 = vmatpush1.msra.mxu0 0.0
    %2505 = vmatprep.subr.mxu0 0.0
    %2506 = vmatpush1.msra.mxu0 0.0
    %2507 = vmatprep.subr.mxu0 0.0
    %2508 = vmatpush1.msra.mxu0 0.0
    %2509 = vmatprep.subr.mxu0 0.0
    %2510 = vmatpush1.msra.mxu0 0.0
    %2511 = vmatprep.subr.mxu0 0.0
    %2512 = vmatpush1.msra.mxu0 0.0
    %2513 = vmatprep.subr.mxu0 0.0
    %2514 = vmatpush1.msra.mxu0 0.0
    %2515 = vmatprep.subr.mxu0 0.0
    %2516 = vmatpush1.msra.mxu0 0.0
    %2517 = vmatprep.subr.mxu0 0.0
    %2518 = vmatpush1.msra.mxu0 0.0
    %2519 = vmatprep.subr.mxu0 0.0
    %2520 = vmatpush1.msra.mxu0 0.0
    %2521 = vmatprep.subr.mxu0 0.0
    %2522 = vmatpush1.msra.mxu0 0.0
    %2523 = vmatprep.subr.mxu0 0.0
    %2524 = vmatpush1.msra.mxu0 0.0
    %2525 = vmatprep.subr.mxu0 0.0
    %2526 = vmatpush1.msra.mxu0 0.0
    %2527 = vmatprep.subr.mxu0 0.0
    %2528 = vmatpush1.msra.mxu0 0.0
    %2529 = vmatprep.subr.mxu0 0.0
    %2530 = vmatpush1.msra.mxu0 0.0
    %2531 = vmatprep.subr.mxu0 0.0
    %2532 = vmatpush1.msra.mxu0 0.0
    %2533 = vmatprep.subr.mxu0 0.0
    %2534 = vmatpush1.msra.mxu0 0.0
    %2535 = vmatprep.mubr.f32.mxu0 0.0
    %v2536 = vand.u32 %v1699, 4294901760
    %2537 = vmatmul.mubr.f32.gmra.mrb[0].mxu0 %v2536
    %v2538 = vpop.f32.mrb[0].mxu0
    %v2539 = vadd.f32 %v2428, %v2538
    %v2540 = vpop.f32.mrb[0].mxu0
    %2541 = vdwg.mxu0
    %2542 = vmatprep.subr.mxu0 0.0
    %v2543 = vand.u32 %v1672, 4294901760
    %v2544 = vsub.f32 %v1672, %v2543
    %2545 = vmatpush1.msra.mxu0 %v2544
    %2546 = vmatprep.subr.mxu0 0.0
    %v2547 = vand.u32 %v1675, 4294901760
    %v2548 = vsub.f32 %v1675, %v2547
    %2549 = vmatpush1.msra.mxu0 %v2548
    %2550 = vmatprep.subr.mxu0 0.0
    %v2551 = vand.u32 %v1678, 4294901760
    %v2552 = vsub.f32 %v1678, %v2551
    %2553 = vmatpush1.msra.mxu0 %v2552
    %2554 = vmatprep.subr.mxu0 0.0
    %v2555 = vand.u32 %v1681, 4294901760
    %v2556 = vsub.f32 %v1681, %v2555
    %2557 = vmatpush1.msra.mxu0 %v2556
    %2558 = vmatprep.subr.mxu0 0.0
    %v2559 = vand.u32 %v1684, 4294901760
    %v2560 = vsub.f32 %v1684, %v2559
    %2561 = vmatpush1.msra.mxu0 %v2560
    %2562 = vmatprep.subr.mxu0 0.0
    %v2563 = vand.u32 %v1687, 4294901760
    %v2564 = vsub.f32 %v1687, %v2563
    %2565 = vmatpush1.msra.mxu0 %v2564
    %2566 = vmatprep.subr.mxu0 0.0
    %v2567 = vand.u32 %v1690, 4294901760
    %v2568 = vsub.f32 %v1690, %v2567
    %2569 = vmatpush1.msra.mxu0 %v2568
    %2570 = vmatprep.subr.mxu0 0.0
    %v2571 = vand.u32 %v1693, 4294901760
    %v2572 = vsub.f32 %v1693, %v2571
    %2573 = vmatpush1.msra.mxu0 %v2572
    %2574 = vmatprep.subr.mxu0 0.0
    %2575 = vmatpush1.msra.mxu0 0.0
    %2576 = vmatprep.subr.mxu0 0.0
    %2577 = vmatpush1.msra.mxu0 0.0
    %2578 = vmatprep.subr.mxu0 0.0
    %2579 = vmatpush1.msra.mxu0 0.0
    %2580 = vmatprep.subr.mxu0 0.0
    %2581 = vmatpush1.msra.mxu0 0.0
    %2582 = vmatprep.subr.mxu0 0.0
    %2583 = vmatpush1.msra.mxu0 0.0
    %2584 = vmatprep.subr.mxu0 0.0
    %2585 = vmatpush1.msra.mxu0 0.0
    %2586 = vmatprep.subr.mxu0 0.0
    %2587 = vmatpush1.msra.mxu0 0.0
    %2588 = vmatprep.subr.mxu0 0.0
    %2589 = vmatpush1.msra.mxu0 0.0
    %2590 = vmatprep.subr.mxu0 0.0
    %2591 = vmatpush1.msra.mxu0 0.0
    %2592 = vmatprep.subr.mxu0 0.0
    %2593 = vmatpush1.msra.mxu0 0.0
    %2594 = vmatprep.subr.mxu0 0.0
    %2595 = vmatpush1.msra.mxu0 0.0
    %2596 = vmatprep.subr.mxu0 0.0
    %2597 = vmatpush1.msra.mxu0 0.0
    %2598 = vmatprep.subr.mxu0 0.0
    %2599 = vmatpush1.msra.mxu0 0.0
    %2600 = vmatprep.subr.mxu0 0.0
    %2601 = vmatpush1.msra.mxu0 0.0
    %2602 = vmatprep.subr.mxu0 0.0
    %2603 = vmatpush1.msra.mxu0 0.0
    %2604 = vmatprep.subr.mxu0 0.0
    %2605 = vmatpush1.msra.mxu0 0.0
    %2606 = vmatprep.subr.mxu0 0.0
    %2607 = vmatpush1.msra.mxu0 0.0
    %2608 = vmatprep.subr.mxu0 0.0
    %2609 = vmatpush1.msra.mxu0 0.0
    %2610 = vmatprep.subr.mxu0 0.0
    %2611 = vmatpush1.msra.mxu0 0.0
    %2612 = vmatprep.subr.mxu0 0.0
    %2613 = vmatpush1.msra.mxu0 0.0
    %2614 = vmatprep.subr.mxu0 0.0
    %2615 = vmatpush1.msra.mxu0 0.0
    %2616 = vmatprep.subr.mxu0 0.0
    %2617 = vmatpush1.msra.mxu0 0.0
    %2618 = vmatprep.subr.mxu0 0.0
    %2619 = vmatpush1.msra.mxu0 0.0
    %2620 = vmatprep.subr.mxu0 0.0
    %2621 = vmatpush1.msra.mxu0 0.0
    %2622 = vmatprep.mubr.f32.mxu0 0.0
    %v2623 = vand.u32 %v1699, 4294901760
    %v2624 = vsub.f32 %v1699, %v2623
    %2625 = vmatmul.mubr.f32.gmra.mrb[0].mxu0 %v2624
    %v2626 = vpop.f32.mrb[0].mxu0
    %v2627 = vadd.f32 %v2539, %v2626
    %v2628 = vpop.f32.mrb[0].mxu0
    %2629 = vdwg.mxu0
    %2630 = vmatprep.subr.mxu0 0.0
    %v2631 = vand.u32 %v1672, 4294901760
    %2632 = vmatpush1.msra.mxu0 %v2631
    %2633 = vmatprep.subr.mxu0 0.0
    %v2634 = vand.u32 %v1675, 4294901760
    %2635 = vmatpush1.msra.mxu0 %v2634
    %2636 = vmatprep.subr.mxu0 0.0
    %v2637 = vand.u32 %v1678, 4294901760
    %2638 = vmatpush1.msra.mxu0 %v2637
    %2639 = vmatprep.subr.mxu0 0.0
    %v2640 = vand.u32 %v1681, 4294901760
    %2641 = vmatpush1.msra.mxu0 %v2640
    %2642 = vmatprep.subr.mxu0 0.0
    %v2643 = vand.u32 %v1684, 4294901760
    %2644 = vmatpush1.msra.mxu0 %v2643
    %2645 = vmatprep.subr.mxu0 0.0
    %v2646 = vand.u32 %v1687, 4294901760
    %2647 = vmatpush1.msra.mxu0 %v2646
    %2648 = vmatprep.subr.mxu0 0.0
    %v2649 = vand.u32 %v1690, 4294901760
    %2650 = vmatpush1.msra.mxu0 %v2649
    %2651 = vmatprep.subr.mxu0 0.0
    %v2652 = vand.u32 %v1693, 4294901760
    %2653 = vmatpush1.msra.mxu0 %v2652
    %2654 = vmatprep.subr.mxu0 0.0
    %2655 = vmatpush1.msra.mxu0 0.0
    %2656 = vmatprep.subr.mxu0 0.0
    %2657 = vmatpush1.msra.mxu0 0.0
    %2658 = vmatprep.subr.mxu0 0.0
    %2659 = vmatpush1.msra.mxu0 0.0
    %2660 = vmatprep.subr.mxu0 0.0
    %2661 = vmatpush1.msra.mxu0 0.0
    %2662 = vmatprep.subr.mxu0 0.0
    %2663 = vmatpush1.msra.mxu0 0.0
    %2664 = vmatprep.subr.mxu0 0.0
    %2665 = vmatpush1.msra.mxu0 0.0
    %2666 = vmatprep.subr.mxu0 0.0
    %2667 = vmatpush1.msra.mxu0 0.0
    %2668 = vmatprep.subr.mxu0 0.0
    %2669 = vmatpush1.msra.mxu0 0.0
    %2670 = vmatprep.subr.mxu0 0.0
    %2671 = vmatpush1.msra.mxu0 0.0
    %2672 = vmatprep.subr.mxu0 0.0
    %2673 = vmatpush1.msra.mxu0 0.0
    %2674 = vmatprep.subr.mxu0 0.0
    %2675 = vmatpush1.msra.mxu0 0.0
    %2676 = vmatprep.subr.mxu0 0.0
    %2677 = vmatpush1.msra.mxu0 0.0
    %2678 = vmatprep.subr.mxu0 0.0
    %2679 = vmatpush1.msra.mxu0 0.0
    %2680 = vmatprep.subr.mxu0 0.0
    %2681 = vmatpush1.msra.mxu0 0.0
    %2682 = vmatprep.subr.mxu0 0.0
    %2683 = vmatpush1.msra.mxu0 0.0
    %2684 = vmatprep.subr.mxu0 0.0
    %2685 = vmatpush1.msra.mxu0 0.0
    %2686 = vmatprep.subr.mxu0 0.0
    %2687 = vmatpush1.msra.mxu0 0.0
    %2688 = vmatprep.subr.mxu0 0.0
    %2689 = vmatpush1.msra.mxu0 0.0
    %2690 = vmatprep.subr.mxu0 0.0
    %2691 = vmatpush1.msra.mxu0 0.0
    %2692 = vmatprep.subr.mxu0 0.0
    %2693 = vmatpush1.msra.mxu0 0.0
    %2694 = vmatprep.subr.mxu0 0.0
    %2695 = vmatpush1.msra.mxu0 0.0
    %2696 = vmatprep.subr.mxu0 0.0
    %2697 = vmatpush1.msra.mxu0 0.0
    %2698 = vmatprep.subr.mxu0 0.0
    %2699 = vmatpush1.msra.mxu0 0.0
    %2700 = vmatprep.subr.mxu0 0.0
    %2701 = vmatpush1.msra.mxu0 0.0
    %2702 = vmatprep.mubr.f32.mxu0 0.0
    %v2703 = vand.u32 %v1699, 4294901760
    %v2704 = vsub.f32 %v1699, %v2703
    %v2705 = vand.u32 %v2704, 4294901760
    %2706 = vmatmul.mubr.f32.gmra.mrb[0].mxu0 %v2705
    %v2707 = vpop.f32.mrb[0].mxu0
    %v2708 = vadd.f32 %v2627, %v2707
    %v2709 = vpop.f32.mrb[0].mxu0
    %2710 = vdwg.mxu0
    %2711 = vmatprep.subr.mxu0 0.0
    %v2712 = vand.u32 %v1672, 4294901760
    %v2713 = vsub.f32 %v1672, %v2712
    %v2714 = vand.u32 %v2713, 4294901760
    %2715 = vmatpush1.msra.mxu0 %v2714
    %2716 = vmatprep.subr.mxu0 0.0
    %v2717 = vand.u32 %v1675, 4294901760
    %v2718 = vsub.f32 %v1675, %v2717
    %v2719 = vand.u32 %v2718, 4294901760
    %2720 = vmatpush1.msra.mxu0 %v2719
    %2721 = vmatprep.subr.mxu0 0.0
    %v2722 = vand.u32 %v1678, 4294901760
    %v2723 = vsub.f32 %v1678, %v2722
    %v2724 = vand.u32 %v2723, 4294901760
    %2725 = vmatpush1.msra.mxu0 %v2724
    %2726 = vmatprep.subr.mxu0 0.0
    %v2727 = vand.u32 %v1681, 4294901760
    %v2728 = vsub.f32 %v1681, %v2727
    %v2729 = vand.u32 %v2728, 4294901760
    %2730 = vmatpush1.msra.mxu0 %v2729
    %2731 = vmatprep.subr.mxu0 0.0
    %v2732 = vand.u32 %v1684, 4294901760
    %v2733 = vsub.f32 %v1684, %v2732
    %v2734 = vand.u32 %v2733, 4294901760
    %2735 = vmatpush1.msra.mxu0 %v2734
    %2736 = vmatprep.subr.mxu0 0.0
    %v2737 = vand.u32 %v1687, 4294901760
    %v2738 = vsub.f32 %v1687, %v2737
    %v2739 = vand.u32 %v2738, 4294901760
    %2740 = vmatpush1.msra.mxu0 %v2739
    %2741 = vmatprep.subr.mxu0 0.0
    %v2742 = vand.u32 %v1690, 4294901760
    %v2743 = vsub.f32 %v1690, %v2742
    %v2744 = vand.u32 %v2743, 4294901760
    %2745 = vmatpush1.msra.mxu0 %v2744
    %2746 = vmatprep.subr.mxu0 0.0
    %v2747 = vand.u32 %v1693, 4294901760
    %v2748 = vsub.f32 %v1693, %v2747
    %v2749 = vand.u32 %v2748, 4294901760
    %2750 = vmatpush1.msra.mxu0 %v2749
    %2751 = vmatprep.subr.mxu0 0.0
    %2752 = vmatpush1.msra.mxu0 0.0
    %2753 = vmatprep.subr.mxu0 0.0
    %2754 = vmatpush1.msra.mxu0 0.0
    %2755 = vmatprep.subr.mxu0 0.0
    %2756 = vmatpush1.msra.mxu0 0.0
    %2757 = vmatprep.subr.mxu0 0.0
    %2758 = vmatpush1.msra.mxu0 0.0
    %2759 = vmatprep.subr.mxu0 0.0
    %2760 = vmatpush1.msra.mxu0 0.0
    %2761 = vmatprep.subr.mxu0 0.0
    %2762 = vmatpush1.msra.mxu0 0.0
    %2763 = vmatprep.subr.mxu0 0.0
    %2764 = vmatpush1.msra.mxu0 0.0
    %2765 = vmatprep.subr.mxu0 0.0
    %2766 = vmatpush1.msra.mxu0 0.0
    %2767 = vmatprep.subr.mxu0 0.0
    %2768 = vmatpush1.msra.mxu0 0.0
    %2769 = vmatprep.subr.mxu0 0.0
    %2770 = vmatpush1.msra.mxu0 0.0
    %2771 = vmatprep.subr.mxu0 0.0
    %2772 = vmatpush1.msra.mxu0 0.0
    %2773 = vmatprep.subr.mxu0 0.0
    %2774 = vmatpush1.msra.mxu0 0.0
    %2775 = vmatprep.subr.mxu0 0.0
    %2776 = vmatpush1.msra.mxu0 0.0
    %2777 = vmatprep.subr.mxu0 0.0
    %2778 = vmatpush1.msra.mxu0 0.0
    %2779 = vmatprep.subr.mxu0 0.0
    %2780 = vmatpush1.msra.mxu0 0.0
    %2781 = vmatprep.subr.mxu0 0.0
    %2782 = vmatpush1.msra.mxu0 0.0
    %2783 = vmatprep.subr.mxu0 0.0
    %2784 = vmatpush1.msra.mxu0 0.0
    %2785 = vmatprep.subr.mxu0 0.0
    %2786 = vmatpush1.msra.mxu0 0.0
    %2787 = vmatprep.subr.mxu0 0.0
    %2788 = vmatpush1.msra.mxu0 0.0
    %2789 = vmatprep.subr.mxu0 0.0
    %2790 = vmatpush1.msra.mxu0 0.0
    %2791 = vmatprep.subr.mxu0 0.0
    %2792 = vmatpush1.msra.mxu0 0.0
    %2793 = vmatprep.subr.mxu0 0.0
    %2794 = vmatpush1.msra.mxu0 0.0
    %2795 = vmatprep.subr.mxu0 0.0
    %2796 = vmatpush1.msra.mxu0 0.0
    %2797 = vmatprep.subr.mxu0 0.0
    %2798 = vmatpush1.msra.mxu0 0.0
    %2799 = vmatprep.mubr.f32.mxu0 0.0
    %v2800 = vand.u32 %v1699, 4294901760
    %2801 = vmatmul.mubr.f32.gmra.mrb[0].mxu0 %v2800
    %v2802 = vpop.f32.mrb[0].mxu0
    %v2803 = vadd.f32 %v2708, %v2802
    %v2804 = vpop.f32.mrb[0].mxu0
    %2805 = vdwg.mxu0
    %2806 = vmatprep.subr.mxu0 0.0
    %v2807 = vand.u32 %v1672, 4294901760
    %2808 = vmatpush1.msra.mxu0 %v2807
    %2809 = vmatprep.subr.mxu0 0.0
    %v2810 = vand.u32 %v1675, 4294901760
    %2811 = vmatpush1.msra.mxu0 %v2810
    %2812 = vmatprep.subr.mxu0 0.0
    %v2813 = vand.u32 %v1678, 4294901760
    %2814 = vmatpush1.msra.mxu0 %v2813
    %2815 = vmatprep.subr.mxu0 0.0
    %v2816 = vand.u32 %v1681, 4294901760
    %2817 = vmatpush1.msra.mxu0 %v2816
    %2818 = vmatprep.subr.mxu0 0.0
    %v2819 = vand.u32 %v1684, 4294901760
    %2820 = vmatpush1.msra.mxu0 %v2819
    %2821 = vmatprep.subr.mxu0 0.0
    %v2822 = vand.u32 %v1687, 4294901760
    %2823 = vmatpush1.msra.mxu0 %v2822
    %2824 = vmatprep.subr.mxu0 0.0
    %v2825 = vand.u32 %v1690, 4294901760
    %2826 = vmatpush1.msra.mxu0 %v2825
    %2827 = vmatprep.subr.mxu0 0.0
    %v2828 = vand.u32 %v1693, 4294901760
    %2829 = vmatpush1.msra.mxu0 %v2828
    %2830 = vmatprep.subr.mxu0 0.0
    %2831 = vmatpush1.msra.mxu0 0.0
    %2832 = vmatprep.subr.mxu0 0.0
    %2833 = vmatpush1.msra.mxu0 0.0
    %2834 = vmatprep.subr.mxu0 0.0
    %2835 = vmatpush1.msra.mxu0 0.0
    %2836 = vmatprep.subr.mxu0 0.0
    %2837 = vmatpush1.msra.mxu0 0.0
    %2838 = vmatprep.subr.mxu0 0.0
    %2839 = vmatpush1.msra.mxu0 0.0
    %2840 = vmatprep.subr.mxu0 0.0
    %2841 = vmatpush1.msra.mxu0 0.0
    %2842 = vmatprep.subr.mxu0 0.0
    %2843 = vmatpush1.msra.mxu0 0.0
    %2844 = vmatprep.subr.mxu0 0.0
    %2845 = vmatpush1.msra.mxu0 0.0
    %2846 = vmatprep.subr.mxu0 0.0
    %2847 = vmatpush1.msra.mxu0 0.0
    %2848 = vmatprep.subr.mxu0 0.0
    %2849 = vmatpush1.msra.mxu0 0.0
    %2850 = vmatprep.subr.mxu0 0.0
    %2851 = vmatpush1.msra.mxu0 0.0
    %2852 = vmatprep.subr.mxu0 0.0
    %2853 = vmatpush1.msra.mxu0 0.0
    %2854 = vmatprep.subr.mxu0 0.0
    %2855 = vmatpush1.msra.mxu0 0.0
    %2856 = vmatprep.subr.mxu0 0.0
    %2857 = vmatpush1.msra.mxu0 0.0
    %2858 = vmatprep.subr.mxu0 0.0
    %2859 = vmatpush1.msra.mxu0 0.0
    %2860 = vmatprep.subr.mxu0 0.0
    %2861 = vmatpush1.msra.mxu0 0.0
    %2862 = vmatprep.subr.mxu0 0.0
    %2863 = vmatpush1.msra.mxu0 0.0
    %2864 = vmatprep.subr.mxu0 0.0
    %2865 = vmatpush1.msra.mxu0 0.0
    %2866 = vmatprep.subr.mxu0 0.0
    %2867 = vmatpush1.msra.mxu0 0.0
    %2868 = vmatprep.subr.mxu0 0.0
    %2869 = vmatpush1.msra.mxu0 0.0
    %2870 = vmatprep.subr.mxu0 0.0
    %2871 = vmatpush1.msra.mxu0 0.0
    %2872 = vmatprep.subr.mxu0 0.0
    %2873 = vmatpush1.msra.mxu0 0.0
    %2874 = vmatprep.subr.mxu0 0.0
    %2875 = vmatpush1.msra.mxu0 0.0
    %2876 = vmatprep.subr.mxu0 0.0
    %2877 = vmatpush1.msra.mxu0 0.0
    %2878 = vmatprep.mubr.f32.mxu0 0.0
    %v2879 = vand.u32 %v1699, 4294901760
    %2880 = vmatmul.mubr.f32.gmra.mrb[0].mxu0 %v2879
    %v2881 = vpop.f32.mrb[0].mxu0
    %v2882 = vadd.f32 %v2803, %v2881
    %v2883 = vpop.f32.mrb[0].mxu0
    %2884 = vdwg.mxu0
    %v2888 = vcombine.low %v2344, %v2346
    %v2890 = vunpack.c.l.s4 1966171168
    %v2891 = vunpack.c.0.s8 %v2890
    %v2892 = vlaneseq
    %v2893 = vshrl.u32 %v2892, 7
    %v2894 = vsub.s32 %v2891, %v2893
    %v2895 = vrot.slane %v2888, %v2894
    %v2897 = vunpack.c.l.s4 1966171168
    %v2898 = vunpack.c.0.s8 %v2897
    %v2899 = vlaneseq
    %v2900 = vshrl.u32 %v2899, 7
    %v2901 = vsub.s32 %v2898, %v2900
    %v2902 = vrot.slane %v2882, %v2901
    %v2903 = vcombine.low %v2895, %v2902
    %v2905 = vunpack.c.l.s4 1966171168
    %v2906 = vunpack.c.0.s8 %v2905
    %v2907 = vlaneseq
    %v2908 = vshrl.u32 %v2907, 7
    %v2909 = vsub.s32 %v2906, %v2908
    %v2910 = vrot.slane %v2903, %v2909
    %v2912 = vlaneseq
    %vm2913 = vcmp.ge.s32.totalorder %v2912, 0
    %vm2914 = vcmp.lt.s32.totalorder %v2912, 384
    %vm2915 = vmand %vm2913, %vm2914
    %2916 = vst.msk [vmem:[#allocation3] sm:$0x7] %vm2915, %v2910
    // Predicated region
    $region22: #{tpu_custom_call.1} parent=1 // pred_check
      _
    $region23: #{tpu_custom_call.1} parent=1 // pred_check_branch
      %2918 = sbr.rel (0) target = $region25
    $region24: #{tpu_custom_call.1} parent=1 // pred_region
      %s2920 = ssub.s32 48, 48
      %2921 = vsyncadd [#allocation4], %s2920
      %s2923 = sshll.u32 [#allocation3], 4
      %s2924 = int_to_ptr.vmem [resolvable:$true] %s2923
      %2926 = dma.vmem_to_hbm [thread:$0]  %s2924, 48, %s5, [#allocation4]
    $region25: #{tpu_custom_call.1} parent=1 // pred_fallthru
      _
    // Predicated region
    $region26: #{tpu_custom_call.1} parent=1 // pred_check
      _
    $region27: #{tpu_custom_call.1} parent=1 // pred_check_branch
      %2928 = sbr.rel (0) target = $region29
    $region28: #{tpu_custom_call.1} parent=1 // pred_region
      %2929 = dma.done [#allocation4], 48
    $region29: #{tpu_custom_call.1} parent=1 // pred_fallthru
      _
    %2930 = vsyncpa [#allocation4], 1

</llo_original>
